<compile_context>
chip_gen: v5e
topology: v5e:2x2
jax: 0.10.0
libtpu: 0.0.40
codegen_flags: <defaults>
</compile_context>

<pallas_src>
import numpy as np

import jax
import jax.numpy as jnp
from jax import lax
from jax.experimental import pallas as pl
from jax.experimental.pallas import tpu as pltpu

_CompilerParams = getattr(pltpu, "CompilerParams", None)
if _CompilerParams is None:            # older jax releases
    _CompilerParams = pltpu.TPUCompilerParams


# ----------------------------------------------------------------------------
# Host-side weight re-layout (pure index permutation, done once at init)
# ----------------------------------------------------------------------------
def _conv_pool_dims(config, in_channel, spatial):
    """Walk the config; this fused instantiation assumes each conv is immediately
    followed by 'M' and W*Cout == 128 at every conv (true for the scaled config)."""
    dims = []
    h = w = spatial
    c = in_channel
    items = list(config)
    i = 0
    while i < len(items):
        cout = items[i]
        assert cout != "M", "unexpected pooling layer position"
        assert i + 1 < len(items) and items[i + 1] == "M", \
            "fused-kernel instantiation assumes each conv is followed by MaxPool2d"
        assert w * cout == 128, "lane-dense design requires W*Cout == 128 per conv"
        assert h % 2 == 0 and w % 2 == 0
        dims.append((h, w, c, cout))
        h //= 2
        w //= 2
        c = cout
        i += 2
    return dims, (h, w, c)


def _conv_merged_weight(w_oihw, b, Wd):
    """Lower a 3x3 / stride-1 / pad-1 conv acting on a (rows=H, cols=W*Cin)
    row-dense layout to ONE matmul with K = 3*W*Cin:
        out[h, :] = lhs[h, :] @ wm,   lhs[h] = [padact[h] | padact[h+1] | padact[h+2]]
    kw taps, channel mixing and the W zero-padding are folded into the columns.
    Output columns are parity-major: col = (w%2)*(W*Cout//2) + (w//2)*Cout + co,
    so the fused 2x2 maxpool reduces W-pairs with a single half-lane max."""
    w_np = np.asarray(w_oihw, np.float32)            # (Cout, Cin, 3, 3), torch layout
    Cout, Cin = w_np.shape[0], w_np.shape[1]
    kin = Wd * Cin
    nlanes = Wd * Cout
    half = nlanes // 2

    def col0(wo):
        return (wo % 2) * half + (wo // 2) * Cout

    wm = np.zeros((3 * kin, nlanes), np.float32)
    for kh in range(3):
        for kw in range(3):
            tap = w_np[:, :, kh, kw].T               # (Cin, Cout)
            for wo in range(Wd):
                wi = wo + kw - 1
                if 0 <= wi < Wd:
                    wm[kh * kin + wi * Cin: kh * kin + (wi + 1) * Cin,
                       col0(wo):col0(wo) + Cout] = tap
    brow = np.zeros((1, nlanes), np.float32)
    b_np = np.asarray(b, np.float32)
    for wo in range(Wd):
        brow[0, col0(wo):col0(wo) + Cout] = b_np
    return wm, brow


def _fc1_permuted(w1_oi, Hf, Wf, Cf):
    """Permute the first FC weight into a single (Hf*Wf*Cf, out) matrix whose row
    order matches the kernel's flattened feature layout (h-major, then w*Cf + c),
    preserving torch.flatten(NCHW, 1) semantics."""
    w_np = np.asarray(w1_oi, np.float32)             # (out, Cf*Hf*Wf), torch layout
    out_dim = w_np.shape[0]
    w1p = np.zeros((Hf * Wf * Cf, out_dim), np.float32)
    for h in range(Hf):
        for w in range(Wf):
            for c in range(Cf):
                w1p[h * Wf * Cf + w * Cf + c, :] = w_np[:, c * Hf * Wf + h * Wf + w]
    return w1p


# ----------------------------------------------------------------------------
# Fused Pallas kernel (whole network, B_TILE images per grid step)
# ----------------------------------------------------------------------------
def _build_kernel(conv_dims, b_tile, fc_feat_dims):
    n_conv = len(conv_dims)
    hf, wf, cf = fc_feat_dims
    wc = wf * cf

    def kernel(*refs):
        f32, bf16 = jnp.float32, jnp.bfloat16
        it = iter(refs)
        x_ref = next(it)
        conv_wb = [(next(it), next(it)) for _ in range(n_conv)]
        w1p_ref = next(it)
        b1_ref = next(it)
        w2_ref = next(it)
        b2_ref = next(it)
        w3_ref = next(it)
        b3_ref = next(it)
        o_ref = next(it)
        lhs_refs = [next(it) for _ in range(n_conv)]
        fc_ref = next(it)

        # Activation value: rows = b*H + h, cols = w*C + c (channels-last in lanes).
        v = x_ref[...]                                        # (B*H0, W0*Cin0) f32

        for li, (H, Wd, Cin, Cout) in enumerate(conv_dims):
            wm_ref, brow_ref = conv_wb[li]
            lhs_ref = lhs_refs[li]                            # (B*H, 3*kin) f32 scratch
            kin = Wd * Cin
            nl = Wd * Cout                                    # == 128 (lane dense)
            half = nl // 2
            BH = b_tile * H
            zrow = jnp.zeros((1, kin), f32)

            # im2row in H: three row-shifted copies of the activation merged in K.
            # Every region read below is rewritten every step (megacore-safe).
            lhs_ref[:, kin:2 * kin] = v                       # kh = 1 (unshifted)
            lhs_ref[1:BH, 0:kin] = v[0:BH - 1, :]             # kh = 0 (shift down)
            lhs_ref[0:BH - 1, 2 * kin:3 * kin] = v[1:BH, :]   # kh = 2 (shift up)
            for b in range(b_tile):                           # per-image H zero-padding
                lhs_ref[b * H:b * H + 1, 0:kin] = zrow
                lhs_ref[b * H + H - 1:b * H + H, 2 * kin:3 * kin] = zrow

            # Single merged-K MXU matmul (K = 3*W*Cin, N = 128), bf16 in / f32 acc.
            acc = jnp.dot(lhs_ref[...].astype(bf16), wm_ref[...],
                          preferred_element_type=f32)         # (B*H, 128)
            y = jnp.maximum(acc + brow_ref[...], 0.0)         # bias + ReLU

            # Fused 2x2 maxpool: H-pool over row pairs, W-pool over parity halves.
            y = y.reshape(BH // 2, 2, nl)
            y = jnp.maximum(y[:, 0, :], y[:, 1, :])           # (B*H/2, 128)
            v = jnp.maximum(y[:, :half], y[:, half:])         # (B*H/2, 64), col = w*Cout + co

        # Flatten per image into (B, Hf*Wf*Cf); torch.flatten(NCHW) order is folded
        # into the host-side permutation of the FC1 weight rows.
        for b in range(b_tile):
            for h in range(hf):
                fc_ref[b:b + 1, h * wc:(h + 1) * wc] = v[b * hf + h:b * hf + h + 1, :]

        f = fc_ref[...].astype(bf16)                          # (B, 128)
        z = jnp.maximum(
            jnp.dot(f, w1p_ref[...], preferred_element_type=f32) + b1_ref[...], 0.0)
        # TODO(synk): nn.Dropout(0.25) applied as identity (eval-mode semantics).
        z = jnp.maximum(
            jnp.dot(z.astype(bf16), w2_ref[...], preferred_element_type=f32) + b2_ref[...],
            0.0)
        # TODO(synk): nn.Dropout(0.25) applied as identity (eval-mode semantics).
        out = jnp.dot(z.astype(bf16), w3_ref[...], preferred_element_type=f32) + b3_ref[...]
        o_ref[0] = out.astype(o_ref.dtype)                    # lane-dense (B, 128) slab

    return kernel


# ----------------------------------------------------------------------------
# Model: parameter init (PyTorch layouts) and fused forward
# ----------------------------------------------------------------------------
def init_vgg_params(key, config, in_channel=3, fc_in=128, fc_hidden=64, out_ch=10):
    """Synthetic weights in PyTorch layouts: conv (Cout,Cin,3,3), linear (out,in)."""
    params = {"convs": [], "fcs": []}
    c = in_channel
    for item in config:
        if item == "M":
            continue
        key, k_w, k_b = jax.random.split(key, 3)
        w = jax.random.normal(k_w, (item, c, 3, 3), jnp.float32) / np.sqrt(9.0 * c)
        b = jax.random.normal(k_b, (item,), jnp.float32) * 0.01
        params["convs"].append((w, b))
        c = item
    dims = [fc_in, fc_hidden, fc_hidden, out_ch]
    for i in range(3):
        key, k_w, k_b = jax.random.split(key, 3)
        w = jax.random.normal(k_w, (dims[i + 1], dims[i]), jnp.float32) / np.sqrt(float(dims[i]))
        b = jax.random.normal(k_b, (dims[i + 1],), jnp.float32) * 0.01
        params["fcs"].append((w, b))
    return params


def build_vgg_forward(params, config, in_channel, spatial, b_tile=4, out_pad=128):
    conv_dims, (hf, wf, cf) = _conv_pool_dims(config, in_channel, spatial)
    n_conv = len(conv_dims)
    assert n_conv == len(params["convs"])

    operands = []
    weight_specs = []
    scratch_shapes = []
    for (H, Wd, Cin, Cout), (w, b) in zip(conv_dims, params["convs"]):
        wm, brow = _conv_merged_weight(w, b, Wd)
        operands += [jnp.asarray(wm, jnp.bfloat16), jnp.asarray(brow, jnp.float32)]
        weight_specs += [
            pl.BlockSpec(tuple(int(d) for d in wm.shape), lambda i: (0, 0)),
            pl.BlockSpec(tuple(int(d) for d in brow.shape), lambda i: (0, 0)),
        ]
        scratch_shapes.append(pltpu.VMEM((b_tile * H, 3 * Wd * Cin), jnp.float32))
    scratch_shapes.append(pltpu.VMEM((b_tile, hf * wf * cf), jnp.float32))

    (w1, b1), (w2, b2), (w3, b3) = params["fcs"]
    out_ch = int(np.asarray(w3).shape[0])
    assert out_pad % 128 == 0 and out_pad >= out_ch
    # Lane-dense logits: zero-pad the last FC's columns to 128 lanes host-side.
    w3_pad = np.zeros((int(np.asarray(w3).shape[1]), out_pad), np.float32)
    w3_pad[:, :out_ch] = np.asarray(w3, np.float32).T
    b3_pad = np.zeros((1, out_pad), np.float32)
    b3_pad[0, :out_ch] = np.asarray(b3, np.float32)

    fc_ops = [
        jnp.asarray(_fc1_permuted(w1, hf, wf, cf), jnp.bfloat16),
        jnp.asarray(b1, jnp.float32).reshape(1, -1),
        jnp.asarray(np.asarray(w2, np.float32).T, jnp.bfloat16),
        jnp.asarray(b2, jnp.float32).reshape(1, -1),
        jnp.asarray(w3_pad, jnp.bfloat16),
        jnp.asarray(b3_pad, jnp.float32),
    ]
    operands += fc_ops
    weight_specs += [
        pl.BlockSpec(tuple(int(d) for d in op.shape), lambda i: (0, 0)) for op in fc_ops
    ]

    kernel = _build_kernel(conv_dims, b_tile, (hf, wf, cf))
    H0, W0, C0 = conv_dims[0][0], conv_dims[0][1], conv_dims[0][2]

    def forward(x_nchw):
        n = x_nchw.shape[0]
        assert n % b_tile == 0, "batch must be a multiple of b_tile"  # TODO(synk): pad remainder tiles
        g = n // b_tile
        # NCHW -> row-dense (N*H0, W0*Cin); channels-last maps C into the lane dim.
        x_rows = (jnp.transpose(x_nchw, (0, 2, 3, 1))
                  .reshape(n * H0, W0 * C0).astype(jnp.float32))
        out = pl.pallas_call(
            kernel,
            out_shape=jax.ShapeDtypeStruct((g, b_tile, out_pad), jnp.float32),
            grid=(g,),
            in_specs=[pl.BlockSpec((b_tile * H0, W0 * C0), lambda i: (i, 0))] + weight_specs,
            out_specs=pl.BlockSpec((1, b_tile, out_pad), lambda i: (i, 0, 0)),
            scratch_shapes=scratch_shapes,
            compiler_params=_CompilerParams(dimension_semantics=("parallel",)),
        )(x_rows, *operands)
        return out.reshape(n, out_pad)[:, :out_ch]

    return forward


# ----------------------------------------------------------------------------
# Pure-XLA reference (only used to verify the fused kernel numerically).
# Both weights AND activations are bf16-rounded at MXU boundaries, matching the
# kernel's numerics, so the tolerance is not hiding activation-quantization error.
# ----------------------------------------------------------------------------
def vgg_reference(params, config, x_nchw):
    f32, bf16 = jnp.float32, jnp.bfloat16
    rnd = lambda t: t.astype(bf16).astype(f32)
    x = jnp.transpose(x_nchw, (0, 2, 3, 1)).astype(f32)          # NHWC
    ci = 0
    for item in config:
        if item == "M":
            x = lax.reduce_window(x, -jnp.inf, lax.max,
                                  (1, 2, 2, 1), (1, 2, 2, 1), "VALID")
        else:
            w, b = params["convs"][ci]
            ci += 1
            w_hwio = jnp.transpose(rnd(w), (2, 3, 1, 0))          # (3,3,Cin,Cout)
            x = lax.conv_general_dilated(rnd(x), w_hwio, (1, 1), "SAME",
                                         dimension_numbers=("NHWC", "HWIO", "NHWC"))
            x = jnp.maximum(x + b, 0.0)
    f = jnp.transpose(x, (0, 3, 1, 2)).reshape(x.shape[0], -1)    # torch.flatten(NCHW, 1)
    (w1, b1), (w2, b2), (w3, b3) = params["fcs"]
    f = jnp.maximum(rnd(f) @ rnd(w1).T + b1, 0.0)
    f = jnp.maximum(rnd(f) @ rnd(w2).T + b2, 0.0)
    return rnd(f) @ rnd(w3).T + b3


if __name__ == "__main__":
    # Small VGG-style config (scaled-down channels / FC widths of the reference).
    config = [8, "M", 16, "M", 32, "M"]
    batch, in_ch, spatial, b_tile = 8, 3, 16, 4       # grid=(2,) -> both v7x TCs busy
    n_pool = sum(1 for c in config if c == "M")
    last_c = [c for c in config if c != "M"][-1]
    fc_in = last_c * (spatial // (2 ** n_pool)) ** 2  # analog of 512*7*7

    key = jax.random.PRNGKey(0)
    key, kx = jax.random.split(key)
    x = jax.random.normal(kx, (batch, in_ch, spatial, spatial), jnp.float32)   # NCHW

    params = init_vgg_params(key, config, in_channel=in_ch,
                             fc_in=fc_in, fc_hidden=64, out_ch=10)

    vgg_forward = jax.jit(build_vgg_forward(params, config, in_ch, spatial, b_tile=b_tile))
    out = vgg_forward(x)
    jax.block_until_ready(out)
    assert out.shape == (batch, 10)

    # Numerical check against the pure-XLA reference (matched bf16 rounding).
    ref = vgg_reference(params, config, x)
    err = float(jnp.max(jnp.abs(out - ref)))
    scale = float(jnp.max(jnp.abs(ref)))
    assert err <= 5e-2 * scale + 5e-2, f"kernel/reference mismatch: max_err={err}, scale={scale}"

    print("KERNEL_OK")
</pallas_src>

<mosaic_0001>
module attributes {stable_mosaic.version = 11 : i64} {
  func.func @kernel(%arg0: i32, %arg1: memref<64x48xf32, #tpu.memory_space<vmem>>, %arg2: memref<144x128xbf16, #tpu.memory_space<vmem>>, %arg3: memref<1x128xf32, #tpu.memory_space<vmem>>, %arg4: memref<192x128xbf16, #tpu.memory_space<vmem>>, %arg5: memref<1x128xf32, #tpu.memory_space<vmem>>, %arg6: memref<192x128xbf16, #tpu.memory_space<vmem>>, %arg7: memref<1x128xf32, #tpu.memory_space<vmem>>, %arg8: memref<128x64xbf16, #tpu.memory_space<vmem>>, %arg9: memref<1x64xf32, #tpu.memory_space<vmem>>, %arg10: memref<64x64xbf16, #tpu.memory_space<vmem>>, %arg11: memref<1x64xf32, #tpu.memory_space<vmem>>, %arg12: memref<64x128xbf16, #tpu.memory_space<vmem>>, %arg13: memref<1x128xf32, #tpu.memory_space<vmem>>, %arg14: memref<1x4x128xf32, #tpu.memory_space<vmem>>, %arg15: memref<64x144xf32, #tpu.memory_space<vmem>>, %arg16: memref<32x192xf32, #tpu.memory_space<vmem>>, %arg17: memref<16x192xf32, #tpu.memory_space<vmem>>, %arg18: memref<4x128xf32, #tpu.memory_space<vmem>>) attributes {dimension_semantics = [#tpu.dimension_semantics<parallel>], iteration_bounds = array<i64: 2>, scalar_prefetch = 0 : i64, scratch_operands = 4 : i64, tpu.core_type = #tpu.core_type<tc>, window_params = [{transform_indices = @transform_0, window_bounds = array<i64: 64, 48>}, {pipeline_mode = #tpu.pipeline_mode<synchronous>, transform_indices = @transform_1, window_bounds = array<i64: 144, 128>}, {pipeline_mode = #tpu.pipeline_mode<synchronous>, transform_indices = @transform_2, window_bounds = array<i64: 1, 128>}, {pipeline_mode = #tpu.pipeline_mode<synchronous>, transform_indices = @transform_3, window_bounds = array<i64: 192, 128>}, {pipeline_mode = #tpu.pipeline_mode<synchronous>, transform_indices = @transform_4, window_bounds = array<i64: 1, 128>}, {pipeline_mode = #tpu.pipeline_mode<synchronous>, transform_indices = @transform_5, window_bounds = array<i64: 192, 128>}, {pipeline_mode = #tpu.pipeline_mode<synchronous>, transform_indices = @transform_6, window_bounds = array<i64: 1, 128>}, {pipeline_mode = #tpu.pipeline_mode<synchronous>, transform_indices = @transform_7, window_bounds = array<i64: 128, 64>}, {pipeline_mode = #tpu.pipeline_mode<synchronous>, transform_indices = @transform_8, window_bounds = array<i64: 1, 64>}, {pipeline_mode = #tpu.pipeline_mode<synchronous>, transform_indices = @transform_9, window_bounds = array<i64: 64, 64>}, {pipeline_mode = #tpu.pipeline_mode<synchronous>, transform_indices = @transform_10, window_bounds = array<i64: 1, 64>}, {pipeline_mode = #tpu.pipeline_mode<synchronous>, transform_indices = @transform_11, window_bounds = array<i64: 64, 128>}, {pipeline_mode = #tpu.pipeline_mode<synchronous>, transform_indices = @transform_12, window_bounds = array<i64: 1, 128>}, {transform_indices = @transform_13, window_bounds = array<i64: 1, 4, 128>}]} {
    %c0 = arith.constant 0 : index
    %c0_0 = arith.constant 0 : index
    %0 = vector.load %arg1[%c0, %c0_0] : memref<64x48xf32, #tpu.memory_space<vmem>>, vector<64x48xf32>
    %cst = arith.constant 0.000000e+00 : f32
    %1 = vector.broadcast %cst : f32 to vector<1x48xf32>
    %c0_1 = arith.constant 0 : index
    %c48 = arith.constant 48 : index
    %2 = vector.load %arg15[%c0_1, %c48] : memref<64x144xf32, #tpu.memory_space<vmem>>, vector<64x48xf32>
    tpu.vector_store %arg15[%c0_1, %c48], %0 {strides = array<i32>} : memref<64x144xf32, #tpu.memory_space<vmem>>, vector<64x48xf32>,
    %3 = vector.extract_strided_slice %0 {offsets = [0, 0], sizes = [63, 48], strides = [1, 1]} : vector<64x48xf32> to vector<63x48xf32>
    %c1 = arith.constant 1 : index
    %c0_2 = arith.constant 0 : index
    %4 = vector.load %arg15[%c1, %c0_2] : memref<64x144xf32, #tpu.memory_space<vmem>>, vector<63x48xf32>
    tpu.vector_store %arg15[%c1, %c0_2], %3 {strides = array<i32>} : memref<64x144xf32, #tpu.memory_space<vmem>>, vector<63x48xf32>,
    %5 = vector.extract_strided_slice %0 {offsets = [1, 0], sizes = [63, 48], strides = [1, 1]} : vector<64x48xf32> to vector<63x48xf32>
    %c0_3 = arith.constant 0 : index
    %c96 = arith.constant 96 : index
    %6 = vector.load %arg15[%c0_3, %c96] : memref<64x144xf32, #tpu.memory_space<vmem>>, vector<63x48xf32>
    tpu.vector_store %arg15[%c0_3, %c96], %5 {strides = array<i32>} : memref<64x144xf32, #tpu.memory_space<vmem>>, vector<63x48xf32>,
    %c0_4 = arith.constant 0 : index
    %c0_5 = arith.constant 0 : index
    %7 = vector.load %arg15[%c0_4, %c0_5] : memref<64x144xf32, #tpu.memory_space<vmem>>, vector<1x48xf32>
    tpu.vector_store %arg15[%c0_4, %c0_5], %1 {strides = array<i32>} : memref<64x144xf32, #tpu.memory_space<vmem>>, vector<1x48xf32>,
    %c15 = arith.constant 15 : index
    %c96_6 = arith.constant 96 : index
    %8 = vector.load %arg15[%c15, %c96_6] : memref<64x144xf32, #tpu.memory_space<vmem>>, vector<1x48xf32>
    tpu.vector_store %arg15[%c15, %c96_6], %1 {strides = array<i32>} : memref<64x144xf32, #tpu.memory_space<vmem>>, vector<1x48xf32>,
    %c16 = arith.constant 16 : index
    %c0_7 = arith.constant 0 : index
    %9 = vector.load %arg15[%c16, %c0_7] : memref<64x144xf32, #tpu.memory_space<vmem>>, vector<1x48xf32>
    tpu.vector_store %arg15[%c16, %c0_7], %1 {strides = array<i32>} : memref<64x144xf32, #tpu.memory_space<vmem>>, vector<1x48xf32>,
    %c31 = arith.constant 31 : index
    %c96_8 = arith.constant 96 : index
    %10 = vector.load %arg15[%c31, %c96_8] : memref<64x144xf32, #tpu.memory_space<vmem>>, vector<1x48xf32>
    tpu.vector_store %arg15[%c31, %c96_8], %1 {strides = array<i32>} : memref<64x144xf32, #tpu.memory_space<vmem>>, vector<1x48xf32>,
    %c32 = arith.constant 32 : index
    %c0_9 = arith.constant 0 : index
    %11 = vector.load %arg15[%c32, %c0_9] : memref<64x144xf32, #tpu.memory_space<vmem>>, vector<1x48xf32>
    tpu.vector_store %arg15[%c32, %c0_9], %1 {strides = array<i32>} : memref<64x144xf32, #tpu.memory_space<vmem>>, vector<1x48xf32>,
    %c47 = arith.constant 47 : index
    %c96_10 = arith.constant 96 : index
    %12 = vector.load %arg15[%c47, %c96_10] : memref<64x144xf32, #tpu.memory_space<vmem>>, vector<1x48xf32>
    tpu.vector_store %arg15[%c47, %c96_10], %1 {strides = array<i32>} : memref<64x144xf32, #tpu.memory_space<vmem>>, vector<1x48xf32>,
    %c48_11 = arith.constant 48 : index
    %c0_12 = arith.constant 0 : index
    %13 = vector.load %arg15[%c48_11, %c0_12] : memref<64x144xf32, #tpu.memory_space<vmem>>, vector<1x48xf32>
    tpu.vector_store %arg15[%c48_11, %c0_12], %1 {strides = array<i32>} : memref<64x144xf32, #tpu.memory_space<vmem>>, vector<1x48xf32>,
    %c63 = arith.constant 63 : index
    %c96_13 = arith.constant 96 : index
    %14 = vector.load %arg15[%c63, %c96_13] : memref<64x144xf32, #tpu.memory_space<vmem>>, vector<1x48xf32>
    tpu.vector_store %arg15[%c63, %c96_13], %1 {strides = array<i32>} : memref<64x144xf32, #tpu.memory_space<vmem>>, vector<1x48xf32>,
    %c0_14 = arith.constant 0 : index
    %c0_15 = arith.constant 0 : index
    %15 = vector.load %arg15[%c0_14, %c0_15] : memref<64x144xf32, #tpu.memory_space<vmem>>, vector<64x144xf32>
    %16 = arith.truncf %15 : vector<64x144xf32> to vector<64x144xbf16>
    %c0_16 = arith.constant 0 : index
    %c0_17 = arith.constant 0 : index
    %17 = vector.load %arg2[%c0_16, %c0_17] : memref<144x128xbf16, #tpu.memory_space<vmem>>, vector<144x128xbf16>
    %cst_18 = arith.constant dense<0.000000e+00> : vector<64x128xf32>
    %18 = tpu.matmul %16, %17, %cst_18 {dimension_numbers = #tpu.dot_dimension_numbers<[1], [0], [0], [1], [0, 0, 1, 1], [], []>} : vector<64x144xbf16>, vector<144x128xbf16>, vector<64x128xf32> -> vector<64x128xf32>
    %c0_19 = arith.constant 0 : index
    %c0_20 = arith.constant 0 : index
    %19 = vector.load %arg3[%c0_19, %c0_20] : memref<1x128xf32, #tpu.memory_space<vmem>>, vector<1x128xf32>
    %20 = vector.broadcast %19 : vector<1x128xf32> to vector<64x128xf32>
    %21 = arith.addf %18, %20 : vector<64x128xf32>
    %cst_21 = arith.constant 0.000000e+00 : f32
    %22 = vector.broadcast %cst_21 : f32 to vector<64x128xf32>
    %23 = arith.maximumf %21, %22 : vector<64x128xf32>
    %24 = vector.shape_cast %23 : vector<64x128xf32> to vector<32x2x128xf32>
    %25 = vector.extract_strided_slice %24 {offsets = [0, 0, 0], sizes = [32, 1, 128], strides = [1, 1, 1]} : vector<32x2x128xf32> to vector<32x1x128xf32>
    %26 = vector.shape_cast %25 : vector<32x1x128xf32> to vector<32x128xf32>
    %27 = vector.extract_strided_slice %24 {offsets = [0, 1, 0], sizes = [32, 1, 128], strides = [1, 1, 1]} : vector<32x2x128xf32> to vector<32x1x128xf32>
    %28 = vector.shape_cast %27 : vector<32x1x128xf32> to vector<32x128xf32>
    %29 = arith.maximumf %26, %28 : vector<32x128xf32>
    %30 = vector.extract_strided_slice %29 {offsets = [0, 0], sizes = [32, 64], strides = [1, 1]} : vector<32x128xf32> to vector<32x64xf32>
    %31 = vector.extract_strided_slice %29 {offsets = [0, 64], sizes = [32, 64], strides = [1, 1]} : vector<32x128xf32> to vector<32x64xf32>
    %32 = arith.maximumf %30, %31 : vector<32x64xf32>
    %cst_22 = arith.constant 0.000000e+00 : f32
    %33 = vector.broadcast %cst_22 : f32 to vector<1x64xf32>
    %c0_23 = arith.constant 0 : index
    %c64 = arith.constant 64 : index
    %34 = vector.load %arg16[%c0_23, %c64] : memref<32x192xf32, #tpu.memory_space<vmem>>, vector<32x64xf32>
    tpu.vector_store %arg16[%c0_23, %c64], %32 {strides = array<i32>} : memref<32x192xf32, #tpu.memory_space<vmem>>, vector<32x64xf32>,
    %35 = vector.extract_strided_slice %32 {offsets = [0, 0], sizes = [31, 64], strides = [1, 1]} : vector<32x64xf32> to vector<31x64xf32>
    %c1_24 = arith.constant 1 : index
    %c0_25 = arith.constant 0 : index
    %36 = vector.load %arg16[%c1_24, %c0_25] : memref<32x192xf32, #tpu.memory_space<vmem>>, vector<31x64xf32>
    tpu.vector_store %arg16[%c1_24, %c0_25], %35 {strides = array<i32>} : memref<32x192xf32, #tpu.memory_space<vmem>>, vector<31x64xf32>,
    %37 = vector.extract_strided_slice %32 {offsets = [1, 0], sizes = [31, 64], strides = [1, 1]} : vector<32x64xf32> to vector<31x64xf32>
    %c0_26 = arith.constant 0 : index
    %c128 = arith.constant 128 : index
    %38 = vector.load %arg16[%c0_26, %c128] : memref<32x192xf32, #tpu.memory_space<vmem>>, vector<31x64xf32>
    tpu.vector_store %arg16[%c0_26, %c128], %37 {strides = array<i32>} : memref<32x192xf32, #tpu.memory_space<vmem>>, vector<31x64xf32>,
    %c0_27 = arith.constant 0 : index
    %c0_28 = arith.constant 0 : index
    %39 = vector.load %arg16[%c0_27, %c0_28] : memref<32x192xf32, #tpu.memory_space<vmem>>, vector<1x64xf32>
    tpu.vector_store %arg16[%c0_27, %c0_28], %33 {strides = array<i32>} : memref<32x192xf32, #tpu.memory_space<vmem>>, vector<1x64xf32>,
    %c7 = arith.constant 7 : index
    %c128_29 = arith.constant 128 : index
    %40 = vector.load %arg16[%c7, %c128_29] : memref<32x192xf32, #tpu.memory_space<vmem>>, vector<1x64xf32>
    tpu.vector_store %arg16[%c7, %c128_29], %33 {strides = array<i32>} : memref<32x192xf32, #tpu.memory_space<vmem>>, vector<1x64xf32>,
    %c8 = arith.constant 8 : index
    %c0_30 = arith.constant 0 : index
    %41 = vector.load %arg16[%c8, %c0_30] : memref<32x192xf32, #tpu.memory_space<vmem>>, vector<1x64xf32>
    tpu.vector_store %arg16[%c8, %c0_30], %33 {strides = array<i32>} : memref<32x192xf32, #tpu.memory_space<vmem>>, vector<1x64xf32>,
    %c15_31 = arith.constant 15 : index
    %c128_32 = arith.constant 128 : index
    %42 = vector.load %arg16[%c15_31, %c128_32] : memref<32x192xf32, #tpu.memory_space<vmem>>, vector<1x64xf32>
    tpu.vector_store %arg16[%c15_31, %c128_32], %33 {strides = array<i32>} : memref<32x192xf32, #tpu.memory_space<vmem>>, vector<1x64xf32>,
    %c16_33 = arith.constant 16 : index
    %c0_34 = arith.constant 0 : index
    %43 = vector.load %arg16[%c16_33, %c0_34] : memref<32x192xf32, #tpu.memory_space<vmem>>, vector<1x64xf32>
    tpu.vector_store %arg16[%c16_33, %c0_34], %33 {strides = array<i32>} : memref<32x192xf32, #tpu.memory_space<vmem>>, vector<1x64xf32>,
    %c23 = arith.constant 23 : index
    %c128_35 = arith.constant 128 : index
    %44 = vector.load %arg16[%c23, %c128_35] : memref<32x192xf32, #tpu.memory_space<vmem>>, vector<1x64xf32>
    tpu.vector_store %arg16[%c23, %c128_35], %33 {strides = array<i32>} : memref<32x192xf32, #tpu.memory_space<vmem>>, vector<1x64xf32>,
    %c24 = arith.constant 24 : index
    %c0_36 = arith.constant 0 : index
    %45 = vector.load %arg16[%c24, %c0_36] : memref<32x192xf32, #tpu.memory_space<vmem>>, vector<1x64xf32>
    tpu.vector_store %arg16[%c24, %c0_36], %33 {strides = array<i32>} : memref<32x192xf32, #tpu.memory_space<vmem>>, vector<1x64xf32>,
    %c31_37 = arith.constant 31 : index
    %c128_38 = arith.constant 128 : index
    %46 = vector.load %arg16[%c31_37, %c128_38] : memref<32x192xf32, #tpu.memory_space<vmem>>, vector<1x64xf32>
    tpu.vector_store %arg16[%c31_37, %c128_38], %33 {strides = array<i32>} : memref<32x192xf32, #tpu.memory_space<vmem>>, vector<1x64xf32>,
    %c0_39 = arith.constant 0 : index
    %c0_40 = arith.constant 0 : index
    %47 = vector.load %arg16[%c0_39, %c0_40] : memref<32x192xf32, #tpu.memory_space<vmem>>, vector<32x192xf32>
    %48 = arith.truncf %47 : vector<32x192xf32> to vector<32x192xbf16>
    %c0_41 = arith.constant 0 : index
    %c0_42 = arith.constant 0 : index
    %49 = vector.load %arg4[%c0_41, %c0_42] : memref<192x128xbf16, #tpu.memory_space<vmem>>, vector<192x128xbf16>
    %cst_43 = arith.constant dense<0.000000e+00> : vector<32x128xf32>
    %50 = tpu.matmul %48, %49, %cst_43 {dimension_numbers = #tpu.dot_dimension_numbers<[1], [0], [0], [1], [0, 0, 1, 1], [], []>} : vector<32x192xbf16>, vector<192x128xbf16>, vector<32x128xf32> -> vector<32x128xf32>
    %c0_44 = arith.constant 0 : index
    %c0_45 = arith.constant 0 : index
    %51 = vector.load %arg5[%c0_44, %c0_45] : memref<1x128xf32, #tpu.memory_space<vmem>>, vector<1x128xf32>
    %52 = vector.broadcast %51 : vector<1x128xf32> to vector<32x128xf32>
    %53 = arith.addf %50, %52 : vector<32x128xf32>
    %cst_46 = arith.constant 0.000000e+00 : f32
    %54 = vector.broadcast %cst_46 : f32 to vector<32x128xf32>
    %55 = arith.maximumf %53, %54 : vector<32x128xf32>
    %56 = vector.shape_cast %55 : vector<32x128xf32> to vector<16x2x128xf32>
    %57 = vector.extract_strided_slice %56 {offsets = [0, 0, 0], sizes = [16, 1, 128], strides = [1, 1, 1]} : vector<16x2x128xf32> to vector<16x1x128xf32>
    %58 = vector.shape_cast %57 : vector<16x1x128xf32> to vector<16x128xf32>
    %59 = vector.extract_strided_slice %56 {offsets = [0, 1, 0], sizes = [16, 1, 128], strides = [1, 1, 1]} : vector<16x2x128xf32> to vector<16x1x128xf32>
    %60 = vector.shape_cast %59 : vector<16x1x128xf32> to vector<16x128xf32>
    %61 = arith.maximumf %58, %60 : vector<16x128xf32>
    %62 = vector.extract_strided_slice %61 {offsets = [0, 0], sizes = [16, 64], strides = [1, 1]} : vector<16x128xf32> to vector<16x64xf32>
    %63 = vector.extract_strided_slice %61 {offsets = [0, 64], sizes = [16, 64], strides = [1, 1]} : vector<16x128xf32> to vector<16x64xf32>
    %64 = arith.maximumf %62, %63 : vector<16x64xf32>
    %cst_47 = arith.constant 0.000000e+00 : f32
    %65 = vector.broadcast %cst_47 : f32 to vector<1x64xf32>
    %c0_48 = arith.constant 0 : index
    %c64_49 = arith.constant 64 : index
    %66 = vector.load %arg17[%c0_48, %c64_49] : memref<16x192xf32, #tpu.memory_space<vmem>>, vector<16x64xf32>
    tpu.vector_store %arg17[%c0_48, %c64_49], %64 {strides = array<i32>} : memref<16x192xf32, #tpu.memory_space<vmem>>, vector<16x64xf32>,
    %67 = vector.extract_strided_slice %64 {offsets = [0, 0], sizes = [15, 64], strides = [1, 1]} : vector<16x64xf32> to vector<15x64xf32>
    %c1_50 = arith.constant 1 : index
    %c0_51 = arith.constant 0 : index
    %68 = vector.load %arg17[%c1_50, %c0_51] : memref<16x192xf32, #tpu.memory_space<vmem>>, vector<15x64xf32>
    tpu.vector_store %arg17[%c1_50, %c0_51], %67 {strides = array<i32>} : memref<16x192xf32, #tpu.memory_space<vmem>>, vector<15x64xf32>,
    %69 = vector.extract_strided_slice %64 {offsets = [1, 0], sizes = [15, 64], strides = [1, 1]} : vector<16x64xf32> to vector<15x64xf32>
    %c0_52 = arith.constant 0 : index
    %c128_53 = arith.constant 128 : index
    %70 = vector.load %arg17[%c0_52, %c128_53] : memref<16x192xf32, #tpu.memory_space<vmem>>, vector<15x64xf32>
    tpu.vector_store %arg17[%c0_52, %c128_53], %69 {strides = array<i32>} : memref<16x192xf32, #tpu.memory_space<vmem>>, vector<15x64xf32>,
    %c0_54 = arith.constant 0 : index
    %c0_55 = arith.constant 0 : index
    %71 = vector.load %arg17[%c0_54, %c0_55] : memref<16x192xf32, #tpu.memory_space<vmem>>, vector<1x64xf32>
    tpu.vector_store %arg17[%c0_54, %c0_55], %65 {strides = array<i32>} : memref<16x192xf32, #tpu.memory_space<vmem>>, vector<1x64xf32>,
    %c3 = arith.constant 3 : index
    %c128_56 = arith.constant 128 : index
    %72 = vector.load %arg17[%c3, %c128_56] : memref<16x192xf32, #tpu.memory_space<vmem>>, vector<1x64xf32>
    tpu.vector_store %arg17[%c3, %c128_56], %65 {strides = array<i32>} : memref<16x192xf32, #tpu.memory_space<vmem>>, vector<1x64xf32>,
    %c4 = arith.constant 4 : index
    %c0_57 = arith.constant 0 : index
    %73 = vector.load %arg17[%c4, %c0_57] : memref<16x192xf32, #tpu.memory_space<vmem>>, vector<1x64xf32>
    tpu.vector_store %arg17[%c4, %c0_57], %65 {strides = array<i32>} : memref<16x192xf32, #tpu.memory_space<vmem>>, vector<1x64xf32>,
    %c7_58 = arith.constant 7 : index
    %c128_59 = arith.constant 128 : index
    %74 = vector.load %arg17[%c7_58, %c128_59] : memref<16x192xf32, #tpu.memory_space<vmem>>, vector<1x64xf32>
    tpu.vector_store %arg17[%c7_58, %c128_59], %65 {strides = array<i32>} : memref<16x192xf32, #tpu.memory_space<vmem>>, vector<1x64xf32>,
    %c8_60 = arith.constant 8 : index
    %c0_61 = arith.constant 0 : index
    %75 = vector.load %arg17[%c8_60, %c0_61] : memref<16x192xf32, #tpu.memory_space<vmem>>, vector<1x64xf32>
    tpu.vector_store %arg17[%c8_60, %c0_61], %65 {strides = array<i32>} : memref<16x192xf32, #tpu.memory_space<vmem>>, vector<1x64xf32>,
    %c11 = arith.constant 11 : index
    %c128_62 = arith.constant 128 : index
    %76 = vector.load %arg17[%c11, %c128_62] : memref<16x192xf32, #tpu.memory_space<vmem>>, vector<1x64xf32>
    tpu.vector_store %arg17[%c11, %c128_62], %65 {strides = array<i32>} : memref<16x192xf32, #tpu.memory_space<vmem>>, vector<1x64xf32>,
    %c12 = arith.constant 12 : index
    %c0_63 = arith.constant 0 : index
    %77 = vector.load %arg17[%c12, %c0_63] : memref<16x192xf32, #tpu.memory_space<vmem>>, vector<1x64xf32>
    tpu.vector_store %arg17[%c12, %c0_63], %65 {strides = array<i32>} : memref<16x192xf32, #tpu.memory_space<vmem>>, vector<1x64xf32>,
    %c15_64 = arith.constant 15 : index
    %c128_65 = arith.constant 128 : index
    %78 = vector.load %arg17[%c15_64, %c128_65] : memref<16x192xf32, #tpu.memory_space<vmem>>, vector<1x64xf32>
    tpu.vector_store %arg17[%c15_64, %c128_65], %65 {strides = array<i32>} : memref<16x192xf32, #tpu.memory_space<vmem>>, vector<1x64xf32>,
    %c0_66 = arith.constant 0 : index
    %c0_67 = arith.constant 0 : index
    %79 = vector.load %arg17[%c0_66, %c0_67] : memref<16x192xf32, #tpu.memory_space<vmem>>, vector<16x192xf32>
    %80 = arith.truncf %79 : vector<16x192xf32> to vector<16x192xbf16>
    %c0_68 = arith.constant 0 : index
    %c0_69 = arith.constant 0 : index
    %81 = vector.load %arg6[%c0_68, %c0_69] : memref<192x128xbf16, #tpu.memory_space<vmem>>, vector<192x128xbf16>
    %cst_70 = arith.constant dense<0.000000e+00> : vector<16x128xf32>
    %82 = tpu.matmul %80, %81, %cst_70 {dimension_numbers = #tpu.dot_dimension_numbers<[1], [0], [0], [1], [0, 0, 1, 1], [], []>} : vector<16x192xbf16>, vector<192x128xbf16>, vector<16x128xf32> -> vector<16x128xf32>
    %c0_71 = arith.constant 0 : index
    %c0_72 = arith.constant 0 : index
    %83 = vector.load %arg7[%c0_71, %c0_72] : memref<1x128xf32, #tpu.memory_space<vmem>>, vector<1x128xf32>
    %84 = vector.broadcast %83 : vector<1x128xf32> to vector<16x128xf32>
    %85 = arith.addf %82, %84 : vector<16x128xf32>
    %cst_73 = arith.constant 0.000000e+00 : f32
    %86 = vector.broadcast %cst_73 : f32 to vector<16x128xf32>
    %87 = arith.maximumf %85, %86 : vector<16x128xf32>
    %88 = vector.shape_cast %87 : vector<16x128xf32> to vector<8x2x128xf32>
    %89 = vector.extract_strided_slice %88 {offsets = [0, 0, 0], sizes = [8, 1, 128], strides = [1, 1, 1]} : vector<8x2x128xf32> to vector<8x1x128xf32>
    %90 = vector.shape_cast %89 : vector<8x1x128xf32> to vector<8x128xf32>
    %91 = vector.extract_strided_slice %88 {offsets = [0, 1, 0], sizes = [8, 1, 128], strides = [1, 1, 1]} : vector<8x2x128xf32> to vector<8x1x128xf32>
    %92 = vector.shape_cast %91 : vector<8x1x128xf32> to vector<8x128xf32>
    %93 = arith.maximumf %90, %92 : vector<8x128xf32>
    %94 = vector.extract_strided_slice %93 {offsets = [0, 0], sizes = [8, 64], strides = [1, 1]} : vector<8x128xf32> to vector<8x64xf32>
    %95 = vector.extract_strided_slice %93 {offsets = [0, 64], sizes = [8, 64], strides = [1, 1]} : vector<8x128xf32> to vector<8x64xf32>
    %96 = arith.maximumf %94, %95 : vector<8x64xf32>
    %97 = vector.extract_strided_slice %96 {offsets = [0, 0], sizes = [1, 64], strides = [1, 1]} : vector<8x64xf32> to vector<1x64xf32>
    %c0_74 = arith.constant 0 : index
    %c0_75 = arith.constant 0 : index
    %98 = vector.load %arg18[%c0_74, %c0_75] : memref<4x128xf32, #tpu.memory_space<vmem>>, vector<1x64xf32>
    tpu.vector_store %arg18[%c0_74, %c0_75], %97 {strides = array<i32>} : memref<4x128xf32, #tpu.memory_space<vmem>>, vector<1x64xf32>,
    %99 = vector.extract_strided_slice %96 {offsets = [1, 0], sizes = [1, 64], strides = [1, 1]} : vector<8x64xf32> to vector<1x64xf32>
    %c0_76 = arith.constant 0 : index
    %c64_77 = arith.constant 64 : index
    %100 = vector.load %arg18[%c0_76, %c64_77] : memref<4x128xf32, #tpu.memory_space<vmem>>, vector<1x64xf32>
    tpu.vector_store %arg18[%c0_76, %c64_77], %99 {strides = array<i32>} : memref<4x128xf32, #tpu.memory_space<vmem>>, vector<1x64xf32>,
    %101 = vector.extract_strided_slice %96 {offsets = [2, 0], sizes = [1, 64], strides = [1, 1]} : vector<8x64xf32> to vector<1x64xf32>
    %c1_78 = arith.constant 1 : index
    %c0_79 = arith.constant 0 : index
    %102 = vector.load %arg18[%c1_78, %c0_79] : memref<4x128xf32, #tpu.memory_space<vmem>>, vector<1x64xf32>
    tpu.vector_store %arg18[%c1_78, %c0_79], %101 {strides = array<i32>} : memref<4x128xf32, #tpu.memory_space<vmem>>, vector<1x64xf32>,
    %103 = vector.extract_strided_slice %96 {offsets = [3, 0], sizes = [1, 64], strides = [1, 1]} : vector<8x64xf32> to vector<1x64xf32>
    %c1_80 = arith.constant 1 : index
    %c64_81 = arith.constant 64 : index
    %104 = vector.load %arg18[%c1_80, %c64_81] : memref<4x128xf32, #tpu.memory_space<vmem>>, vector<1x64xf32>
    tpu.vector_store %arg18[%c1_80, %c64_81], %103 {strides = array<i32>} : memref<4x128xf32, #tpu.memory_space<vmem>>, vector<1x64xf32>,
    %105 = vector.extract_strided_slice %96 {offsets = [4, 0], sizes = [1, 64], strides = [1, 1]} : vector<8x64xf32> to vector<1x64xf32>
    %c2 = arith.constant 2 : index
    %c0_82 = arith.constant 0 : index
    %106 = vector.load %arg18[%c2, %c0_82] : memref<4x128xf32, #tpu.memory_space<vmem>>, vector<1x64xf32>
    tpu.vector_store %arg18[%c2, %c0_82], %105 {strides = array<i32>} : memref<4x128xf32, #tpu.memory_space<vmem>>, vector<1x64xf32>,
    %107 = vector.extract_strided_slice %96 {offsets = [5, 0], sizes = [1, 64], strides = [1, 1]} : vector<8x64xf32> to vector<1x64xf32>
    %c2_83 = arith.constant 2 : index
    %c64_84 = arith.constant 64 : index
    %108 = vector.load %arg18[%c2_83, %c64_84] : memref<4x128xf32, #tpu.memory_space<vmem>>, vector<1x64xf32>
    tpu.vector_store %arg18[%c2_83, %c64_84], %107 {strides = array<i32>} : memref<4x128xf32, #tpu.memory_space<vmem>>, vector<1x64xf32>,
    %109 = vector.extract_strided_slice %96 {offsets = [6, 0], sizes = [1, 64], strides = [1, 1]} : vector<8x64xf32> to vector<1x64xf32>
    %c3_85 = arith.constant 3 : index
    %c0_86 = arith.constant 0 : index
    %110 = vector.load %arg18[%c3_85, %c0_86] : memref<4x128xf32, #tpu.memory_space<vmem>>, vector<1x64xf32>
    tpu.vector_store %arg18[%c3_85, %c0_86], %109 {strides = array<i32>} : memref<4x128xf32, #tpu.memory_space<vmem>>, vector<1x64xf32>,
    %111 = vector.extract_strided_slice %96 {offsets = [7, 0], sizes = [1, 64], strides = [1, 1]} : vector<8x64xf32> to vector<1x64xf32>
    %c3_87 = arith.constant 3 : index
    %c64_88 = arith.constant 64 : index
    %112 = vector.load %arg18[%c3_87, %c64_88] : memref<4x128xf32, #tpu.memory_space<vmem>>, vector<1x64xf32>
    tpu.vector_store %arg18[%c3_87, %c64_88], %111 {strides = array<i32>} : memref<4x128xf32, #tpu.memory_space<vmem>>, vector<1x64xf32>,
    %c0_89 = arith.constant 0 : index
    %c0_90 = arith.constant 0 : index
    %113 = vector.load %arg18[%c0_89, %c0_90] : memref<4x128xf32, #tpu.memory_space<vmem>>, vector<4x128xf32>
    %114 = arith.truncf %113 : vector<4x128xf32> to vector<4x128xbf16>
    %c0_91 = arith.constant 0 : index
    %c0_92 = arith.constant 0 : index
    %115 = vector.load %arg8[%c0_91, %c0_92] : memref<128x64xbf16, #tpu.memory_space<vmem>>, vector<128x64xbf16>
    %cst_93 = arith.constant dense<0.000000e+00> : vector<4x64xf32>
    %116 = tpu.matmul %114, %115, %cst_93 {dimension_numbers = #tpu.dot_dimension_numbers<[1], [0], [0], [1], [0, 0, 1, 1], [], []>} : vector<4x128xbf16>, vector<128x64xbf16>, vector<4x64xf32> -> vector<4x64xf32>
    %c0_94 = arith.constant 0 : index
    %c0_95 = arith.constant 0 : index
    %117 = vector.load %arg9[%c0_94, %c0_95] : memref<1x64xf32, #tpu.memory_space<vmem>>, vector<1x64xf32>
    %118 = vector.broadcast %117 : vector<1x64xf32> to vector<4x64xf32>
    %119 = arith.addf %116, %118 : vector<4x64xf32>
    %cst_96 = arith.constant 0.000000e+00 : f32
    %120 = vector.broadcast %cst_96 : f32 to vector<4x64xf32>
    %121 = arith.maximumf %119, %120 : vector<4x64xf32>
    %122 = arith.truncf %121 : vector<4x64xf32> to vector<4x64xbf16>
    %c0_97 = arith.constant 0 : index
    %c0_98 = arith.constant 0 : index
    %123 = vector.load %arg10[%c0_97, %c0_98] : memref<64x64xbf16, #tpu.memory_space<vmem>>, vector<64x64xbf16>
    %cst_99 = arith.constant dense<0.000000e+00> : vector<4x64xf32>
    %124 = tpu.matmul %122, %123, %cst_99 {dimension_numbers = #tpu.dot_dimension_numbers<[1], [0], [0], [1], [0, 0, 1, 1], [], []>} : vector<4x64xbf16>, vector<64x64xbf16>, vector<4x64xf32> -> vector<4x64xf32>
    %c0_100 = arith.constant 0 : index
    %c0_101 = arith.constant 0 : index
    %125 = vector.load %arg11[%c0_100, %c0_101] : memref<1x64xf32, #tpu.memory_space<vmem>>, vector<1x64xf32>
    %126 = vector.broadcast %125 : vector<1x64xf32> to vector<4x64xf32>
    %127 = arith.addf %124, %126 : vector<4x64xf32>
    %cst_102 = arith.constant 0.000000e+00 : f32
    %128 = vector.broadcast %cst_102 : f32 to vector<4x64xf32>
    %129 = arith.maximumf %127, %128 : vector<4x64xf32>
    %130 = arith.truncf %129 : vector<4x64xf32> to vector<4x64xbf16>
    %c0_103 = arith.constant 0 : index
    %c0_104 = arith.constant 0 : index
    %131 = vector.load %arg12[%c0_103, %c0_104] : memref<64x128xbf16, #tpu.memory_space<vmem>>, vector<64x128xbf16>
    %cst_105 = arith.constant dense<0.000000e+00> : vector<4x128xf32>
    %132 = tpu.matmul %130, %131, %cst_105 {dimension_numbers = #tpu.dot_dimension_numbers<[1], [0], [0], [1], [0, 0, 1, 1], [], []>} : vector<4x64xbf16>, vector<64x128xbf16>, vector<4x128xf32> -> vector<4x128xf32>
    %c0_106 = arith.constant 0 : index
    %c0_107 = arith.constant 0 : index
    %133 = vector.load %arg13[%c0_106, %c0_107] : memref<1x128xf32, #tpu.memory_space<vmem>>, vector<1x128xf32>
    %134 = vector.broadcast %133 : vector<1x128xf32> to vector<4x128xf32>
    %135 = arith.addf %132, %134 : vector<4x128xf32>
    %c0_108 = arith.constant 0 : index
    %c0_109 = arith.constant 0 : index
    %c0_110 = arith.constant 0 : index
    %136 = vector.load %arg14[%c0_108, %c0_109, %c0_110] : memref<1x4x128xf32, #tpu.memory_space<vmem>>, vector<1x4x128xf32>
    %137 = vector.shape_cast %136 : vector<1x4x128xf32> to vector<4x128xf32>
    %138 = vector.shape_cast %135 : vector<4x128xf32> to vector<1x4x128xf32>
    tpu.vector_store %arg14[%c0_108, %c0_109, %c0_110], %138 {strides = array<i32>} : memref<1x4x128xf32, #tpu.memory_space<vmem>>, vector<1x4x128xf32>,
    return
  }
  func.func @transform_0(%arg0: i32) -> (i32, i32) {
    %c0_i32 = arith.constant 0 : i32
    %c0_i32_0 = arith.constant 0 : i32
    return %arg0, %c0_i32 : i32, i32
  }
  func.func @transform_1(%arg0: i32) -> (i32, i32) {
    %c0_i32 = arith.constant 0 : i32
    %c0_i32_0 = arith.constant 0 : i32
    %c0_i32_1 = arith.constant 0 : i32
    return %c0_i32, %c0_i32_0 : i32, i32
  }
  func.func @transform_2(%arg0: i32) -> (i32, i32) {
    %c0_i32 = arith.constant 0 : i32
    %c0_i32_0 = arith.constant 0 : i32
    %c0_i32_1 = arith.constant 0 : i32
    return %c0_i32, %c0_i32_0 : i32, i32
  }
  func.func @transform_3(%arg0: i32) -> (i32, i32) {
    %c0_i32 = arith.constant 0 : i32
    %c0_i32_0 = arith.constant 0 : i32
    %c0_i32_1 = arith.constant 0 : i32
    return %c0_i32, %c0_i32_0 : i32, i32
  }
  func.func @transform_4(%arg0: i32) -> (i32, i32) {
    %c0_i32 = arith.constant 0 : i32
    %c0_i32_0 = arith.constant 0 : i32
    %c0_i32_1 = arith.constant 0 : i32
    return %c0_i32, %c0_i32_0 : i32, i32
  }
  func.func @transform_5(%arg0: i32) -> (i32, i32) {
    %c0_i32 = arith.constant 0 : i32
    %c0_i32_0 = arith.constant 0 : i32
    %c0_i32_1 = arith.constant 0 : i32
    return %c0_i32, %c0_i32_0 : i32, i32
  }
  func.func @transform_6(%arg0: i32) -> (i32, i32) {
    %c0_i32 = arith.constant 0 : i32
    %c0_i32_0 = arith.constant 0 : i32
    %c0_i32_1 = arith.constant 0 : i32
    return %c0_i32, %c0_i32_0 : i32, i32
  }
  func.func @transform_7(%arg0: i32) -> (i32, i32) {
    %c0_i32 = arith.constant 0 : i32
    %c0_i32_0 = arith.constant 0 : i32
    %c0_i32_1 = arith.constant 0 : i32
    return %c0_i32, %c0_i32_0 : i32, i32
  }
  func.func @transform_8(%arg0: i32) -> (i32, i32) {
    %c0_i32 = arith.constant 0 : i32
    %c0_i32_0 = arith.constant 0 : i32
    %c0_i32_1 = arith.constant 0 : i32
    return %c0_i32, %c0_i32_0 : i32, i32
  }
  func.func @transform_9(%arg0: i32) -> (i32, i32) {
    %c0_i32 = arith.constant 0 : i32
    %c0_i32_0 = arith.constant 0 : i32
    %c0_i32_1 = arith.constant 0 : i32
    return %c0_i32, %c0_i32_0 : i32, i32
  }
  func.func @transform_10(%arg0: i32) -> (i32, i32) {
    %c0_i32 = arith.constant 0 : i32
    %c0_i32_0 = arith.constant 0 : i32
    %c0_i32_1 = arith.constant 0 : i32
    return %c0_i32, %c0_i32_0 : i32, i32
  }
  func.func @transform_11(%arg0: i32) -> (i32, i32) {
    %c0_i32 = arith.constant 0 : i32
    %c0_i32_0 = arith.constant 0 : i32
    %c0_i32_1 = arith.constant 0 : i32
    return %c0_i32, %c0_i32_0 : i32, i32
  }
  func.func @transform_12(%arg0: i32) -> (i32, i32) {
    %c0_i32 = arith.constant 0 : i32
    %c0_i32_0 = arith.constant 0 : i32
    %c0_i32_1 = arith.constant 0 : i32
    return %c0_i32, %c0_i32_0 : i32, i32
  }
  func.func @transform_13(%arg0: i32) -> (i32, i32, i32) {
    %c0_i32 = arith.constant 0 : i32
    %c0_i32_0 = arith.constant 0 : i32
    %c0_i32_1 = arith.constant 0 : i32
    return %arg0, %c0_i32, %c0_i32_0 : i32, i32, i32
  }
}

</mosaic_0001>

<llo_original>
// kernel: forward.1
$region0: #{forward.1}
  #allocation0 [shape = 'u32[]', space=smem, size = 0x4, offset = 0x4, fixed_abs, tag = 'smem constant byte address 0x4 - core index']
  #allocation1 [shape = 'u32[72,128]{1,0:T(1,128)}', space=vmem, size = 0x9000, scoped, tag = 'internal scratch']
  #allocation2 [shape = 'f32[64,144]{1,0:T(8,128)}', space=vmem, size = 0x10000, scoped, tag = 'scratch operand']
  #allocation3 [shape = 'f32[32,192]{1,0:T(8,128)}', space=vmem, size = 0x8000, scoped, tag = 'scratch operand']
  #allocation4 [shape = 'f32[16,192]{1,0:T(8,128)}', space=vmem, size = 0x4000, scoped, tag = 'scratch operand']
  #allocation5 [shape = 'f32[4,128]{1,0:T(4,128)}', space=vmem, size = 0x800, scoped, tag = 'scratch operand']
  %s0 = inlined_call_operand.vmem [shape: f32[128,48], index: 0, kind: input, shape index: {}]
  %s1 = inlined_call_operand.vmem [shape: bf16[144,128], index: 1, kind: input, shape index: {}]
  %s2 = inlined_call_operand.vmem [shape: f32[1,128], index: 2, kind: input, shape index: {}]
  %s3 = inlined_call_operand.vmem [shape: bf16[192,128], index: 3, kind: input, shape index: {}]
  %s4 = inlined_call_operand.vmem [shape: f32[1,128], index: 4, kind: input, shape index: {}]
  %s5 = inlined_call_operand.vmem [shape: bf16[192,128], index: 5, kind: input, shape index: {}]
  %s6 = inlined_call_operand.vmem [shape: f32[1,128], index: 6, kind: input, shape index: {}]
  %s7 = inlined_call_operand.vmem [shape: bf16[128,64], index: 7, kind: input, shape index: {}]
  %s8 = inlined_call_operand.vmem [shape: f32[1,64], index: 8, kind: input, shape index: {}]
  %s9 = inlined_call_operand.vmem [shape: bf16[64,64], index: 9, kind: input, shape index: {}]
  %s10 = inlined_call_operand.vmem [shape: f32[1,64], index: 10, kind: input, shape index: {}]
  %s11 = inlined_call_operand.vmem [shape: bf16[64,128], index: 11, kind: input, shape index: {}]
  %s12 = inlined_call_operand.vmem [shape: f32[1,128], index: 12, kind: input, shape index: {}]
  %s13 = inlined_call_operand.hbm [shape: f32[2,4,128], index: 13, kind: output, shape index: {}]
  %s14 = sld [smem:[#allocation0]]
  $region85: #{forward.1} parent=0
    _
  %s16 = ssub.s32 1, %s14
  %s17 = scalar_select 0, %s16, %s14
  $region1: #{forward.1} parent=0
    #allocation6 [shape = 'u8[4096]{0}', space=vmem, size = 0x1000, scoped, tag = 'output window, operand 0']
    #allocation7 [shape = 's32[2]{0}', space=sflag, size = 0x8, scoped, tag = 'scoped memory for forward.1']
    %18 = vsyncpa [#allocation7], 0
    %s19 = scalar_lea.sflag [#allocation7], 1
    %20 = vsyncpa %s19, 0
    loop: start=0, step=1, limit=4
    $region2: #{forward.1} parent=1 // loop_pre_header
      _
    $region3: #{forward.1} parent=1 // loop_header
      %s22 = sphi 0, %s26
      %p23 = scmp.ge.s32.totalorder %s22, 4
      %s32 = sphi 0, %s34
      %s35 = sphi 0, %s32
      %s36 = sphi 0, %s35
      %s52 = sphi 0, %s36
      %s56 = sphi 0, %s56
      %s58 = sphi 0, %s56
      %s59 = sphi 0, %s58
      %s73 = sphi 0, %s59
      %s77 = sphi 0, %s77
      %s79 = sphi 0, %s77
      %s80 = sphi 0, %s79
      %s94 = sphi 0, %s80
      %s98 = sphi 0, %s98
      %s100 = sphi 0, %s98
      %s101 = sphi 0, %s100
      %s115 = sphi 0, %s101
      %s119 = sphi 0, %s119
      %s121 = sphi 0, %s119
      %s122 = sphi 0, %s121
      %s136 = sphi 0, %s122
      %s140 = sphi 0, %s140
      %s142 = sphi 0, %s140
      %s143 = sphi 0, %s142
      %s157 = sphi 0, %s143
      %s161 = sphi 0, %s161
      %s163 = sphi 0, %s161
      %s164 = sphi 0, %s163
      %s178 = sphi 0, %s164
      %s182 = sphi 0, %s182
      %s184 = sphi 0, %s182
      %s185 = sphi 0, %s184
      %s199 = sphi 0, %s185
      %s203 = sphi 0, %s203
      %s205 = sphi 0, %s203
      %s206 = sphi 0, %s205
      %s220 = sphi 0, %s206
      %s224 = sphi 0, %s224
      %s226 = sphi 0, %s224
      %s227 = sphi 0, %s226
      %s241 = sphi 0, %s227
      %s245 = sphi 0, %s245
      %s247 = sphi 0, %s245
      %s248 = sphi 0, %s247
      %s262 = sphi 0, %s248
      %s266 = sphi 0, %s266
      %s268 = sphi 0, %s266
      %s269 = sphi 0, %s268
      %s283 = sphi 0, %s269
      %s287 = sphi 0, %s287
      %s289 = sphi 0, %s287
      %s290 = sphi 0, %s289
      %s304 = sphi 0, %s290
      %s310 = sphi 0, %s312
      %s313 = sphi 0, %s310
      %s314 = sphi 0, %s313
      %s330 = sphi 0, %s314
    $region4: #{forward.1} parent=1 // loop_header_branch
      %25 = sbr.rel (%p23) target = $region8
    $region5: #{forward.1} parent=1 // loop_body
      %s27 = ssub.s32 %s22, 1
      %s28 = ssub.s32 %s22, 2
      %s29 = sadd.s32 %s22, 1
      %s30 = ssub.s32 %s22, %s29
      %p31 = scmp.eq.s32.totalorder %s30, 0
      %s33 = sadd.s32 %s32, 1
      %s34 = scalar_select %p31, %s32, %s33
      %p37 = pneg %p31
      %p38 = scmp.eq.s32.totalorder %s22, 1
      %p39 = por %p37, %p38
      %p40 = scmp.ne.s32.totalorder %s32, %s35
      %p41 = scmp.eq.s32.totalorder %s22, 0
      %p42 = por %p40, %p41
      %p43 = scmp.ne.s32.totalorder %s32, %s35
      %p44 = scmp.eq.s32.totalorder %s27, 1
      %p45 = por %p43, %p44
      %p46 = scmp.ne.s32.totalorder %s35, %s36
      %p47 = scmp.eq.s32.totalorder %s27, 0
      %p48 = por %p46, %p47
      %p49 = scmp.ne.s32.totalorder %s35, %s36
      %p50 = scmp.eq.s32.totalorder %s28, 1
      %p51 = por %p49, %p50
      %p53 = scmp.ne.s32.totalorder %s36, %s52
      %p54 = scmp.eq.s32.totalorder %s28, 0
      %p55 = por %p53, %p54
      %s57 = sadd.s32 %s56, 1
      %p60 = scmp.eq.s32.totalorder %s22, 1
      %p61 = scmp.ne.s32.totalorder %s56, %s58
      %p62 = scmp.eq.s32.totalorder %s22, 0
      %p63 = por %p61, %p62
      %p64 = scmp.ne.s32.totalorder %s56, %s58
      %p65 = scmp.eq.s32.totalorder %s27, 1
      %p66 = por %p64, %p65
      %p67 = scmp.ne.s32.totalorder %s58, %s59
      %p68 = scmp.eq.s32.totalorder %s27, 0
      %p69 = por %p67, %p68
      %p70 = scmp.ne.s32.totalorder %s58, %s59
      %p71 = scmp.eq.s32.totalorder %s28, 1
      %p72 = por %p70, %p71
      %p74 = scmp.ne.s32.totalorder %s59, %s73
      %p75 = scmp.eq.s32.totalorder %s28, 0
      %p76 = por %p74, %p75
      %s78 = sadd.s32 %s77, 1
      %p81 = scmp.eq.s32.totalorder %s22, 1
      %p82 = scmp.ne.s32.totalorder %s77, %s79
      %p83 = scmp.eq.s32.totalorder %s22, 0
      %p84 = por %p82, %p83
      %p85 = scmp.ne.s32.totalorder %s77, %s79
      %p86 = scmp.eq.s32.totalorder %s27, 1
      %p87 = por %p85, %p86
      %p88 = scmp.ne.s32.totalorder %s79, %s80
      %p89 = scmp.eq.s32.totalorder %s27, 0
      %p90 = por %p88, %p89
      %p91 = scmp.ne.s32.totalorder %s79, %s80
      %p92 = scmp.eq.s32.totalorder %s28, 1
      %p93 = por %p91, %p92
      %p95 = scmp.ne.s32.totalorder %s80, %s94
      %p96 = scmp.eq.s32.totalorder %s28, 0
      %p97 = por %p95, %p96
      %s99 = sadd.s32 %s98, 1
      %p102 = scmp.eq.s32.totalorder %s22, 1
      %p103 = scmp.ne.s32.totalorder %s98, %s100
      %p104 = scmp.eq.s32.totalorder %s22, 0
      %p105 = por %p103, %p104
      %p106 = scmp.ne.s32.totalorder %s98, %s100
      %p107 = scmp.eq.s32.totalorder %s27, 1
      %p108 = por %p106, %p107
      %p109 = scmp.ne.s32.totalorder %s100, %s101
      %p110 = scmp.eq.s32.totalorder %s27, 0
      %p111 = por %p109, %p110
      %p112 = scmp.ne.s32.totalorder %s100, %s101
      %p113 = scmp.eq.s32.totalorder %s28, 1
      %p114 = por %p112, %p113
      %p116 = scmp.ne.s32.totalorder %s101, %s115
      %p117 = scmp.eq.s32.totalorder %s28, 0
      %p118 = por %p116, %p117
      %s120 = sadd.s32 %s119, 1
      %p123 = scmp.eq.s32.totalorder %s22, 1
      %p124 = scmp.ne.s32.totalorder %s119, %s121
      %p125 = scmp.eq.s32.totalorder %s22, 0
      %p126 = por %p124, %p125
      %p127 = scmp.ne.s32.totalorder %s119, %s121
      %p128 = scmp.eq.s32.totalorder %s27, 1
      %p129 = por %p127, %p128
      %p130 = scmp.ne.s32.totalorder %s121, %s122
      %p131 = scmp.eq.s32.totalorder %s27, 0
      %p132 = por %p130, %p131
      %p133 = scmp.ne.s32.totalorder %s121, %s122
      %p134 = scmp.eq.s32.totalorder %s28, 1
      %p135 = por %p133, %p134
      %p137 = scmp.ne.s32.totalorder %s122, %s136
      %p138 = scmp.eq.s32.totalorder %s28, 0
      %p139 = por %p137, %p138
      %s141 = sadd.s32 %s140, 1
      %p144 = scmp.eq.s32.totalorder %s22, 1
      %p145 = scmp.ne.s32.totalorder %s140, %s142
      %p146 = scmp.eq.s32.totalorder %s22, 0
      %p147 = por %p145, %p146
      %p148 = scmp.ne.s32.totalorder %s140, %s142
      %p149 = scmp.eq.s32.totalorder %s27, 1
      %p150 = por %p148, %p149
      %p151 = scmp.ne.s32.totalorder %s142, %s143
      %p152 = scmp.eq.s32.totalorder %s27, 0
      %p153 = por %p151, %p152
      %p154 = scmp.ne.s32.totalorder %s142, %s143
      %p155 = scmp.eq.s32.totalorder %s28, 1
      %p156 = por %p154, %p155
      %p158 = scmp.ne.s32.totalorder %s143, %s157
      %p159 = scmp.eq.s32.totalorder %s28, 0
      %p160 = por %p158, %p159
      %s162 = sadd.s32 %s161, 1
      %p165 = scmp.eq.s32.totalorder %s22, 1
      %p166 = scmp.ne.s32.totalorder %s161, %s163
      %p167 = scmp.eq.s32.totalorder %s22, 0
      %p168 = por %p166, %p167
      %p169 = scmp.ne.s32.totalorder %s161, %s163
      %p170 = scmp.eq.s32.totalorder %s27, 1
      %p171 = por %p169, %p170
      %p172 = scmp.ne.s32.totalorder %s163, %s164
      %p173 = scmp.eq.s32.totalorder %s27, 0
      %p174 = por %p172, %p173
      %p175 = scmp.ne.s32.totalorder %s163, %s164
      %p176 = scmp.eq.s32.totalorder %s28, 1
      %p177 = por %p175, %p176
      %p179 = scmp.ne.s32.totalorder %s164, %s178
      %p180 = scmp.eq.s32.totalorder %s28, 0
      %p181 = por %p179, %p180
      %s183 = sadd.s32 %s182, 1
      %p186 = scmp.eq.s32.totalorder %s22, 1
      %p187 = scmp.ne.s32.totalorder %s182, %s184
      %p188 = scmp.eq.s32.totalorder %s22, 0
      %p189 = por %p187, %p188
      %p190 = scmp.ne.s32.totalorder %s182, %s184
      %p191 = scmp.eq.s32.totalorder %s27, 1
      %p192 = por %p190, %p191
      %p193 = scmp.ne.s32.totalorder %s184, %s185
      %p194 = scmp.eq.s32.totalorder %s27, 0
      %p195 = por %p193, %p194
      %p196 = scmp.ne.s32.totalorder %s184, %s185
      %p197 = scmp.eq.s32.totalorder %s28, 1
      %p198 = por %p196, %p197
      %p200 = scmp.ne.s32.totalorder %s185, %s199
      %p201 = scmp.eq.s32.totalorder %s28, 0
      %p202 = por %p200, %p201
      %s204 = sadd.s32 %s203, 1
      %p207 = scmp.eq.s32.totalorder %s22, 1
      %p208 = scmp.ne.s32.totalorder %s203, %s205
      %p209 = scmp.eq.s32.totalorder %s22, 0
      %p210 = por %p208, %p209
      %p211 = scmp.ne.s32.totalorder %s203, %s205
      %p212 = scmp.eq.s32.totalorder %s27, 1
      %p213 = por %p211, %p212
      %p214 = scmp.ne.s32.totalorder %s205, %s206
      %p215 = scmp.eq.s32.totalorder %s27, 0
      %p216 = por %p214, %p215
      %p217 = scmp.ne.s32.totalorder %s205, %s206
      %p218 = scmp.eq.s32.totalorder %s28, 1
      %p219 = por %p217, %p218
      %p221 = scmp.ne.s32.totalorder %s206, %s220
      %p222 = scmp.eq.s32.totalorder %s28, 0
      %p223 = por %p221, %p222
      %s225 = sadd.s32 %s224, 1
      %p228 = scmp.eq.s32.totalorder %s22, 1
      %p229 = scmp.ne.s32.totalorder %s224, %s226
      %p230 = scmp.eq.s32.totalorder %s22, 0
      %p231 = por %p229, %p230
      %p232 = scmp.ne.s32.totalorder %s224, %s226
      %p233 = scmp.eq.s32.totalorder %s27, 1
      %p234 = por %p232, %p233
      %p235 = scmp.ne.s32.totalorder %s226, %s227
      %p236 = scmp.eq.s32.totalorder %s27, 0
      %p237 = por %p235, %p236
      %p238 = scmp.ne.s32.totalorder %s226, %s227
      %p239 = scmp.eq.s32.totalorder %s28, 1
      %p240 = por %p238, %p239
      %p242 = scmp.ne.s32.totalorder %s227, %s241
      %p243 = scmp.eq.s32.totalorder %s28, 0
      %p244 = por %p242, %p243
      %s246 = sadd.s32 %s245, 1
      %p249 = scmp.eq.s32.totalorder %s22, 1
      %p250 = scmp.ne.s32.totalorder %s245, %s247
      %p251 = scmp.eq.s32.totalorder %s22, 0
      %p252 = por %p250, %p251
      %p253 = scmp.ne.s32.totalorder %s245, %s247
      %p254 = scmp.eq.s32.totalorder %s27, 1
      %p255 = por %p253, %p254
      %p256 = scmp.ne.s32.totalorder %s247, %s248
      %p257 = scmp.eq.s32.totalorder %s27, 0
      %p258 = por %p256, %p257
      %p259 = scmp.ne.s32.totalorder %s247, %s248
      %p260 = scmp.eq.s32.totalorder %s28, 1
      %p261 = por %p259, %p260
      %p263 = scmp.ne.s32.totalorder %s248, %s262
      %p264 = scmp.eq.s32.totalorder %s28, 0
      %p265 = por %p263, %p264
      %s267 = sadd.s32 %s266, 1
      %p270 = scmp.eq.s32.totalorder %s22, 1
      %p271 = scmp.ne.s32.totalorder %s266, %s268
      %p272 = scmp.eq.s32.totalorder %s22, 0
      %p273 = por %p271, %p272
      %p274 = scmp.ne.s32.totalorder %s266, %s268
      %p275 = scmp.eq.s32.totalorder %s27, 1
      %p276 = por %p274, %p275
      %p277 = scmp.ne.s32.totalorder %s268, %s269
      %p278 = scmp.eq.s32.totalorder %s27, 0
      %p279 = por %p277, %p278
      %p280 = scmp.ne.s32.totalorder %s268, %s269
      %p281 = scmp.eq.s32.totalorder %s28, 1
      %p282 = por %p280, %p281
      %p284 = scmp.ne.s32.totalorder %s269, %s283
      %p285 = scmp.eq.s32.totalorder %s28, 0
      %p286 = por %p284, %p285
      %s288 = sadd.s32 %s287, 1
      %p291 = scmp.eq.s32.totalorder %s22, 1
      %p292 = scmp.ne.s32.totalorder %s287, %s289
      %p293 = scmp.eq.s32.totalorder %s22, 0
      %p294 = por %p292, %p293
      %p295 = scmp.ne.s32.totalorder %s287, %s289
      %p296 = scmp.eq.s32.totalorder %s27, 1
      %p297 = por %p295, %p296
      %p298 = scmp.ne.s32.totalorder %s289, %s290
      %p299 = scmp.eq.s32.totalorder %s27, 0
      %p300 = por %p298, %p299
      %p301 = scmp.ne.s32.totalorder %s289, %s290
      %p302 = scmp.eq.s32.totalorder %s28, 1
      %p303 = por %p301, %p302
      %p305 = scmp.ne.s32.totalorder %s290, %s304
      %p306 = scmp.eq.s32.totalorder %s28, 0
      %p307 = por %p305, %p306
      %s308 = ssub.s32 %s22, %s29
      %p309 = scmp.eq.s32.totalorder %s308, 0
      %s311 = sadd.s32 %s310, 1
      %s312 = scalar_select %p309, %s310, %s311
      %p315 = pneg %p309
      %p316 = scmp.eq.s32.totalorder %s22, 1
      %p317 = por %p315, %p316
      %p318 = scmp.ne.s32.totalorder %s310, %s313
      %p319 = scmp.eq.s32.totalorder %s22, 0
      %p320 = por %p318, %p319
      %p321 = scmp.ne.s32.totalorder %s310, %s313
      %p322 = scmp.eq.s32.totalorder %s27, 1
      %p323 = por %p321, %p322
      %p324 = scmp.ne.s32.totalorder %s313, %s314
      %p325 = scmp.eq.s32.totalorder %s27, 0
      %p326 = por %p324, %p325
      %p327 = scmp.ne.s32.totalorder %s313, %s314
      %p328 = scmp.eq.s32.totalorder %s28, 1
      %p329 = por %p327, %p328
      %p331 = scmp.ne.s32.totalorder %s314, %s330
      %p332 = scmp.eq.s32.totalorder %s28, 0
      %p333 = por %p331, %p332
      %p334 = scmp.le.s32.totalorder 1, %s22
      %p335 = scmp.lt.s32.totalorder %s22, 3
      %p336 = pnand %p334, %p335
      %p337 = pneg %p336
      // Predicated region
      $region9: #{forward.1} parent=5 // pred_check
        _
      $region10: #{forward.1} parent=5 // pred_check_branch
        %339 = sbr.rel (%p336) target = $region12
      $region11: #{forward.1} parent=5 // pred_region
        %s340 = ssub.s32 %s22, 1
        // Predicated region
        $region13: #{forward.1} parent=11 // pred_check
          %p341 = pneg %p69
        $region14: #{forward.1} parent=11 // pred_check_branch
          %343 = sbr.rel (%p341) target = $region16
        $region15: #{forward.1} parent=11 // pred_region
          _
        $region16: #{forward.1} parent=11 // pred_fallthru
          _
        // Predicated region
        $region17: #{forward.1} parent=11 // pred_check
          %p344 = pneg %p90
        $region18: #{forward.1} parent=11 // pred_check_branch
          %346 = sbr.rel (%p344) target = $region20
        $region19: #{forward.1} parent=11 // pred_region
          _
        $region20: #{forward.1} parent=11 // pred_fallthru
          _
        // Predicated region
        $region21: #{forward.1} parent=11 // pred_check
          %p347 = pneg %p111
        $region22: #{forward.1} parent=11 // pred_check_branch
          %349 = sbr.rel (%p347) target = $region24
        $region23: #{forward.1} parent=11 // pred_region
          _
        $region24: #{forward.1} parent=11 // pred_fallthru
          _
        // Predicated region
        $region25: #{forward.1} parent=11 // pred_check
          %p350 = pneg %p132
        $region26: #{forward.1} parent=11 // pred_check_branch
          %352 = sbr.rel (%p350) target = $region28
        $region27: #{forward.1} parent=11 // pred_region
          _
        $region28: #{forward.1} parent=11 // pred_fallthru
          _
        // Predicated region
        $region29: #{forward.1} parent=11 // pred_check
          %p353 = pneg %p153
        $region30: #{forward.1} parent=11 // pred_check_branch
          %355 = sbr.rel (%p353) target = $region32
        $region31: #{forward.1} parent=11 // pred_region
          _
        $region32: #{forward.1} parent=11 // pred_fallthru
          _
        // Predicated region
        $region33: #{forward.1} parent=11 // pred_check
          %p356 = pneg %p174
        $region34: #{forward.1} parent=11 // pred_check_branch
          %358 = sbr.rel (%p356) target = $region36
        $region35: #{forward.1} parent=11 // pred_region
          _
        $region36: #{forward.1} parent=11 // pred_fallthru
          _
        // Predicated region
        $region37: #{forward.1} parent=11 // pred_check
          %p359 = pneg %p195
        $region38: #{forward.1} parent=11 // pred_check_branch
          %361 = sbr.rel (%p359) target = $region40
        $region39: #{forward.1} parent=11 // pred_region
          _
        $region40: #{forward.1} parent=11 // pred_fallthru
          _
        // Predicated region
        $region41: #{forward.1} parent=11 // pred_check
          %p362 = pneg %p216
        $region42: #{forward.1} parent=11 // pred_check_branch
          %364 = sbr.rel (%p362) target = $region44
        $region43: #{forward.1} parent=11 // pred_region
          _
        $region44: #{forward.1} parent=11 // pred_fallthru
          _
        // Predicated region
        $region45: #{forward.1} parent=11 // pred_check
          %p365 = pneg %p237
        $region46: #{forward.1} parent=11 // pred_check_branch
          %367 = sbr.rel (%p365) target = $region48
        $region47: #{forward.1} parent=11 // pred_region
          _
        $region48: #{forward.1} parent=11 // pred_fallthru
          _
        // Predicated region
        $region49: #{forward.1} parent=11 // pred_check
          %p368 = pneg %p258
        $region50: #{forward.1} parent=11 // pred_check_branch
          %370 = sbr.rel (%p368) target = $region52
        $region51: #{forward.1} parent=11 // pred_region
          _
        $region52: #{forward.1} parent=11 // pred_fallthru
          _
        // Predicated region
        $region53: #{forward.1} parent=11 // pred_check
          %p371 = pneg %p279
        $region54: #{forward.1} parent=11 // pred_check_branch
          %373 = sbr.rel (%p371) target = $region56
        $region55: #{forward.1} parent=11 // pred_region
          _
        $region56: #{forward.1} parent=11 // pred_fallthru
          _
        // Predicated region
        $region57: #{forward.1} parent=11 // pred_check
          %p374 = pneg %p300
        $region58: #{forward.1} parent=11 // pred_check_branch
          %376 = sbr.rel (%p374) target = $region60
        $region59: #{forward.1} parent=11 // pred_region
          _
        $region60: #{forward.1} parent=11 // pred_fallthru
          _
      $region12: #{forward.1} parent=5 // pred_fallthru
        _
      %p377 = scmp.lt.s32.totalorder %s22, 2
      // Predicated region
      $region61: #{forward.1} parent=5 // pred_check
        %p378 = pneg %p377
      $region62: #{forward.1} parent=5 // pred_check_branch
        %380 = sbr.rel (%p378) target = $region64
      $region63: #{forward.1} parent=5 // pred_region
        // Predicated region
        $region65: #{forward.1} parent=63 // pred_check
          %p381 = pneg %p42
        $region66: #{forward.1} parent=63 // pred_check_branch
          %383 = sbr.rel (%p381) target = $region68
        $region67: #{forward.1} parent=63 // pred_region
          %s384 = smul.u32 8, %s22
          %p385 = scmp.lt.s32.totalorder %s384, 15
          %s386 = scalar_select %p385, %s384, 15
          %s387 = smul.addr %s386, 8
          %s388 = scalar_lea.vmem %s0, %s387
          %s389 = smul.u32 8, %s22
        $region68: #{forward.1} parent=63 // pred_fallthru
          _
      $region64: #{forward.1} parent=5 // pred_fallthru
        _
      %p390 = scmp.le.s32.totalorder 1, %s22
      %p391 = scmp.lt.s32.totalorder %s22, 3
      %p392 = pnand %p390, %p391
      %p393 = pneg %p392
      // Predicated region
      $region69: #{forward.1} parent=5 // pred_check
        _
      $region70: #{forward.1} parent=5 // pred_check_branch
        %395 = sbr.rel (%p392) target = $region72
      $region71: #{forward.1} parent=5 // pred_region
        %s396 = ssub.s32 %s22, 1
        %s397 = smul.u32 8, %s27
        %p398 = scmp.lt.s32.totalorder %s397, 15
        %s399 = scalar_select %p398, %s397, 15
        %s400 = smul.addr %s399, 8
        %s401 = scalar_lea.vmem %s0, %s400
        %p402 = pneg %p48
        %p403 = pneg %p45
        %p404 = pneg %p69
        %p405 = pneg %p66
        %p406 = pneg %p90
        %p407 = pneg %p87
        %p408 = pneg %p111
        %p409 = pneg %p108
        %p410 = pneg %p132
        %p411 = pneg %p129
        %p412 = pneg %p153
        %p413 = pneg %p150
        %p414 = pneg %p174
        %p415 = pneg %p171
        %p416 = pneg %p195
        %p417 = pneg %p192
        %p418 = pneg %p216
        %p419 = pneg %p213
        %p420 = pneg %p237
        %p421 = pneg %p234
        %p422 = pneg %p258
        %p423 = pneg %p255
        %p424 = pneg %p279
        %p425 = pneg %p276
        %p426 = pneg %p300
        %p427 = pneg %p297
        %p428 = pneg %p326
        %p429 = pneg %p323
        %s430 = sand.u32 %s313, 1
        %s431 = scalar_lea.sflag [#allocation7], %s430
        %s432 = sand.u32 %s313, 1
        %s433 = smul.addr %s432, 4
        %s434 = scalar_lea.vmem [#allocation6], %s433
        %s435 = smul.u32 8, %s27
        %p436 = scmp.lt.s32.totalorder %s435, 15
        %s437 = scalar_select %p436, %s435, 15
        %s438 = smul.addr %s437, 8
        %s439 = scalar_lea.vmem %s0, %s438
        %s440 = smul.u32 8, %s27
        %v442 = vld [vmem:[%s439] sm:$0xff]
        %v443 = vld [vmem:[%s439 + $0x8] sm:$0xff]
        %v444 = vld [vmem:[%s439 + $0x10] sm:$0xff]
        %v445 = vld [vmem:[%s439 + $0x18] sm:$0xff]
        %v446 = vld [vmem:[%s439 + $0x20] sm:$0xff]
        %v447 = vld [vmem:[%s439 + $0x28] sm:$0xff]
        %v448 = vld [vmem:[%s439 + $0x30] sm:$0xff]
        %v449 = vld [vmem:[%s439 + $0x38] sm:$0xff]
        %458 = vrot.lane.b32.xlu0 %v442, 48
        %v459 = vpop.permute.xlu0 %458
        %460 = vrot.lane.b32.xlu0 %v443, 48
        %v461 = vpop.permute.xlu0 %460
        %462 = vrot.lane.b32.xlu0 %v444, 48
        %v463 = vpop.permute.xlu0 %462
        %464 = vrot.lane.b32.xlu0 %v445, 48
        %v465 = vpop.permute.xlu0 %464
        %466 = vrot.lane.b32.xlu0 %v446, 48
        %v467 = vpop.permute.xlu0 %466
        %468 = vrot.lane.b32.xlu0 %v447, 48
        %v469 = vpop.permute.xlu0 %468
        %470 = vrot.lane.b32.xlu0 %v448, 48
        %v471 = vpop.permute.xlu0 %470
        %472 = vrot.lane.b32.xlu0 %v449, 48
        %v473 = vpop.permute.xlu0 %472
        %vm482 = vcmask 785792
        %483 = vst.msk [vmem:[#allocation2] sm:$0xff] %vm482, %v459
        %484 = vst.msk [vmem:[#allocation2 + $0x10] sm:$0xff] %vm482, %v461
        %485 = vst.msk [vmem:[#allocation2 + $0x20] sm:$0xff] %vm482, %v463
        %486 = vst.msk [vmem:[#allocation2 + $0x30] sm:$0xff] %vm482, %v465
        %487 = vst.msk [vmem:[#allocation2 + $0x40] sm:$0xff] %vm482, %v467
        %488 = vst.msk [vmem:[#allocation2 + $0x50] sm:$0xff] %vm482, %v469
        %489 = vst.msk [vmem:[#allocation2 + $0x60] sm:$0xff] %vm482, %v471
        %490 = vst.msk [vmem:[#allocation2 + $0x70] sm:$0xff] %vm482, %v473
        %vm491 = vcmask 1040384
        %v492 = vrot.slane %v442, 7
        %v493 = vrot.slane %v443, 7
        %v494 = vsel %vm491, %v492, %v493
        %v495 = vrot.slane %v444, 7
        %v496 = vsel %vm491, %v493, %v495
        %v497 = vrot.slane %v445, 7
        %v498 = vsel %vm491, %v495, %v497
        %v499 = vrot.slane %v446, 7
        %v500 = vsel %vm491, %v497, %v499
        %v501 = vrot.slane %v447, 7
        %v502 = vsel %vm491, %v499, %v501
        %v503 = vrot.slane %v448, 7
        %v504 = vsel %vm491, %v501, %v503
        %v505 = vrot.slane %v449, 7
        %v506 = vsel %vm491, %v503, %v505
        %vm515 = vcmask 392193
        %516 = vst.msk [vmem:[#allocation2] sm:$0xfe] %vm515, %v492
        %vm517 = vcmask 392192
        %518 = vst.msk [vmem:[#allocation2 + $0x10] sm:$0xff] %vm517, %v494
        %519 = vst.msk [vmem:[#allocation2 + $0x20] sm:$0xff] %vm517, %v496
        %520 = vst.msk [vmem:[#allocation2 + $0x30] sm:$0xff] %vm517, %v498
        %521 = vst.msk [vmem:[#allocation2 + $0x40] sm:$0xff] %vm517, %v500
        %522 = vst.msk [vmem:[#allocation2 + $0x50] sm:$0xff] %vm517, %v502
        %523 = vst.msk [vmem:[#allocation2 + $0x60] sm:$0xff] %vm517, %v504
        %524 = vst.msk [vmem:[#allocation2 + $0x70] sm:$0xff] %vm517, %v506
        %vm525 = vcmask 1046528
        %v526 = vrot.slane %v442, 1
        %v527 = vrot.slane %v443, 1
        %v528 = vsel %vm525, %v526, %v527
        %v529 = vrot.slane %v444, 1
        %v530 = vsel %vm525, %v527, %v529
        %v531 = vrot.slane %v445, 1
        %v532 = vsel %vm525, %v529, %v531
        %v533 = vrot.slane %v446, 1
        %v534 = vsel %vm525, %v531, %v533
        %v535 = vrot.slane %v447, 1
        %v536 = vsel %vm525, %v533, %v535
        %v537 = vrot.slane %v448, 1
        %v538 = vsel %vm525, %v535, %v537
        %v539 = vrot.slane %v449, 1
        %v540 = vsel %vm525, %v537, %v539
        %541 = vrot.lane.b32.xlu0 %v528, 96
        %v542 = vpop.permute.xlu0 %541
        %543 = vrot.lane.b32.xlu0 %v530, 96
        %v544 = vpop.permute.xlu0 %543
        %545 = vrot.lane.b32.xlu0 %v532, 96
        %v546 = vpop.permute.xlu0 %545
        %547 = vrot.lane.b32.xlu0 %v534, 96
        %v548 = vpop.permute.xlu0 %547
        %549 = vrot.lane.b32.xlu0 %v536, 96
        %v550 = vpop.permute.xlu0 %549
        %551 = vrot.lane.b32.xlu0 %v538, 96
        %v552 = vpop.permute.xlu0 %551
        %553 = vrot.lane.b32.xlu0 %v540, 96
        %v554 = vpop.permute.xlu0 %553
        %555 = vrot.lane.b32.xlu0 %v539, 96
        %v556 = vpop.permute.xlu0 %555
        %vm565 = vcmask 1048320
        %566 = vst.msk [vmem:[#allocation2] sm:$0xff] %vm565, %v542
        %vm567 = vcmask 130048
        %568 = vst.msk [vmem:[#allocation2 + $0x8] sm:$0xff] %vm567, %v542
        %569 = vst.msk [vmem:[#allocation2 + $0x10] sm:$0xff] %vm565, %v544
        %570 = vst.msk [vmem:[#allocation2 + $0x18] sm:$0xff] %vm567, %v544
        %571 = vst.msk [vmem:[#allocation2 + $0x20] sm:$0xff] %vm565, %v546
        %572 = vst.msk [vmem:[#allocation2 + $0x28] sm:$0xff] %vm567, %v546
        %573 = vst.msk [vmem:[#allocation2 + $0x30] sm:$0xff] %vm565, %v548
        %574 = vst.msk [vmem:[#allocation2 + $0x38] sm:$0xff] %vm567, %v548
        %575 = vst.msk [vmem:[#allocation2 + $0x40] sm:$0xff] %vm565, %v550
        %576 = vst.msk [vmem:[#allocation2 + $0x48] sm:$0xff] %vm567, %v550
        %577 = vst.msk [vmem:[#allocation2 + $0x50] sm:$0xff] %vm565, %v552
        %578 = vst.msk [vmem:[#allocation2 + $0x58] sm:$0xff] %vm567, %v552
        %579 = vst.msk [vmem:[#allocation2 + $0x60] sm:$0xff] %vm565, %v554
        %580 = vst.msk [vmem:[#allocation2 + $0x68] sm:$0xff] %vm567, %v554
        %vm581 = vcmask 1047296
        %582 = vst.msk [vmem:[#allocation2 + $0x70] sm:$0x7f] %vm581, %v556
        %vm583 = vcmask 129024
        %584 = vst.msk [vmem:[#allocation2 + $0x78] sm:$0x7f] %vm583, %v556
        %vm585 = vcmask 385024
        %586 = vst.msk [vmem:[#allocation2] sm:$0x1] %vm585, 0.0
        %vm587 = vcmask 1041152
        %588 = vst.msk [vmem:[#allocation2 + $0x17] sm:$0x1] %vm587, 0.0
        %vm589 = vcmask 122880
        %590 = vst.msk [vmem:[#allocation2 + $0x1f] sm:$0x1] %vm589, 0.0
        %591 = vst.msk [vmem:[#allocation2 + $0x20] sm:$0x1] %vm585, 0.0
        %592 = vst.msk [vmem:[#allocation2 + $0x37] sm:$0x1] %vm587, 0.0
        %593 = vst.msk [vmem:[#allocation2 + $0x3f] sm:$0x1] %vm589, 0.0
        %594 = vst.msk [vmem:[#allocation2 + $0x40] sm:$0x1] %vm585, 0.0
        %595 = vst.msk [vmem:[#allocation2 + $0x57] sm:$0x1] %vm587, 0.0
        %596 = vst.msk [vmem:[#allocation2 + $0x5f] sm:$0x1] %vm589, 0.0
        %597 = vst.msk [vmem:[#allocation2 + $0x60] sm:$0x1] %vm585, 0.0
        %598 = vst.msk [vmem:[#allocation2 + $0x77] sm:$0x1] %vm587, 0.0
        %599 = vst.msk [vmem:[#allocation2 + $0x7f] sm:$0x1] %vm589, 0.0
        %v600 = vld [vmem:[#allocation2] sm:$0xff]
        %v601 = vld [vmem:[#allocation2 + $0x8] sm:$0xff]
        %v602 = vld [vmem:[#allocation2 + $0x10] sm:$0xff]
        %v603 = vld [vmem:[#allocation2 + $0x18] sm:$0xff]
        %v604 = vld [vmem:[#allocation2 + $0x20] sm:$0xff]
        %v605 = vld [vmem:[#allocation2 + $0x28] sm:$0xff]
        %v606 = vld [vmem:[#allocation2 + $0x30] sm:$0xff]
        %v607 = vld [vmem:[#allocation2 + $0x38] sm:$0xff]
        %v608 = vld [vmem:[#allocation2 + $0x40] sm:$0xff]
        %v609 = vld [vmem:[#allocation2 + $0x48] sm:$0xff]
        %v610 = vld [vmem:[#allocation2 + $0x50] sm:$0xff]
        %v611 = vld [vmem:[#allocation2 + $0x58] sm:$0xff]
        %v612 = vld [vmem:[#allocation2 + $0x60] sm:$0xff]
        %v613 = vld [vmem:[#allocation2 + $0x68] sm:$0xff]
        %v614 = vld [vmem:[#allocation2 + $0x70] sm:$0xff]
        %v615 = vld [vmem:[#allocation2 + $0x78] sm:$0xff]
        %v616 = vpack.c.bf16 %v602, %v600
        %v617 = vpack.c.bf16 %v603, %v601
        %v618 = vpack.c.bf16 %v606, %v604
        %v619 = vpack.c.bf16 %v607, %v605
        %v620 = vpack.c.bf16 %v610, %v608
        %v621 = vpack.c.bf16 %v611, %v609
        %v622 = vpack.c.bf16 %v614, %v612
        %v623 = vpack.c.bf16 %v615, %v613
        %v624 = vld [vmem:[%s1] sm:$0xf]
        %v625 = vld [vmem:[%s1 + $0x4] sm:$0xf]
        %v626 = vld [vmem:[%s1 + $0x8] sm:$0xf]
        %v627 = vld [vmem:[%s1 + $0xc] sm:$0xf]
        %v628 = vld [vmem:[%s1 + $0x10] sm:$0xf]
        %v629 = vld [vmem:[%s1 + $0x14] sm:$0xf]
        %v630 = vld [vmem:[%s1 + $0x18] sm:$0xf]
        %v631 = vld [vmem:[%s1 + $0x1c] sm:$0xf]
        %v632 = vld [vmem:[%s1 + $0x20] sm:$0xf]
        %v633 = vld [vmem:[%s1 + $0x24] sm:$0xf]
        %v634 = vld [vmem:[%s1 + $0x28] sm:$0xf]
        %v635 = vld [vmem:[%s1 + $0x2c] sm:$0xf]
        %v636 = vld [vmem:[%s1 + $0x30] sm:$0xf]
        %v637 = vld [vmem:[%s1 + $0x34] sm:$0xf]
        %v638 = vld [vmem:[%s1 + $0x38] sm:$0xf]
        %v639 = vld [vmem:[%s1 + $0x3c] sm:$0xf]
        %v640 = vld [vmem:[%s1 + $0x40] sm:$0xf]
        %v641 = vld [vmem:[%s1 + $0x44] sm:$0xf]
        %v642 = vld [vmem:[%s2] sm:$0x1]
        %v644 = vperm.slane %v642, 0
        %v664 = vunpack.c.l.b16 %v624
        %v665 = vunpack.c.l.b16 %v625
        %v666 = vunpack.c.l.b16 %v626
        %v667 = vunpack.c.l.b16 %v627
        %v668 = vunpack.c.l.b16 %v628
        %v669 = vunpack.c.l.b16 %v629
        %v670 = vunpack.c.l.b16 %v630
        %v671 = vunpack.c.l.b16 %v631
        %v672 = vunpack.c.l.b16 %v632
        %v673 = vunpack.c.l.b16 %v633
        %v674 = vunpack.c.l.b16 %v634
        %v675 = vunpack.c.l.b16 %v635
        %v676 = vunpack.c.l.b16 %v636
        %v677 = vunpack.c.l.b16 %v637
        %v678 = vunpack.c.l.b16 %v638
        %v679 = vunpack.c.l.b16 %v639
        %v680 = vunpack.c.l.b16 %v640
        %v681 = vunpack.c.l.b16 %v641
        %v682 = vpack.c.b16 %v665, %v664
        %v683 = vpack.c.b16 %v667, %v666
        %v684 = vpack.c.b16 %v669, %v668
        %v685 = vpack.c.b16 %v671, %v670
        %v686 = vpack.c.b16 %v673, %v672
        %v687 = vpack.c.b16 %v675, %v674
        %v688 = vpack.c.b16 %v677, %v676
        %v689 = vpack.c.b16 %v679, %v678
        %v690 = vpack.c.b16 %v681, %v680
        %v701 = vsel %vm567, %v617, 0
        %v704 = vsel %vm567, %v619, 0
        %v707 = vsel %vm567, %v621, 0
        %v710 = vsel %vm567, %v623, 0
        %712 = vmatpush.bf16.msra.mxu0 %v689
        %713 = vmatpush.bf16.msra.mxu0 %v688
        %714 = vmatpush.bf16.msra.mxu0 %v687
        %715 = vmatpush.bf16.msra.mxu0 %v686
        %716 = vmatpush.bf16.msra.mxu0 %v685
        %717 = vmatpush.bf16.msra.mxu0 %v684
        %718 = vmatpush.bf16.msra.mxu0 %v683
        %719 = vmatpush.bf16.msra.mxu0 %v682
        %720 = vmatmul.bf16.gmra.mxu0 %v616
        %v721 = vpop.f32.mrf.mxu0
        %v722 = vadd.f32 %v644, %v721
        %v723 = vpop.f32.mrf.mxu0
        %v724 = vadd.f32 %v644, %v723
        %725 = vmatmul.bf16.gmra.mxu0 %v618
        %v726 = vpop.f32.mrf.mxu0
        %v727 = vadd.f32 %v644, %v726
        %v728 = vpop.f32.mrf.mxu0
        %v729 = vadd.f32 %v644, %v728
        %730 = vmatmul.bf16.gmra.mxu0 %v620
        %v731 = vpop.f32.mrf.mxu0
        %v732 = vadd.f32 %v644, %v731
        %v733 = vpop.f32.mrf.mxu0
        %v734 = vadd.f32 %v644, %v733
        %735 = vmatmul.bf16.gmra.mxu0 %v622
        %v736 = vpop.f32.mrf.mxu0
        %v737 = vadd.f32 %v644, %v736
        %v738 = vpop.f32.mrf.mxu0
        %v739 = vadd.f32 %v644, %v738
        %740 = vdwg.mxu0
        %741 = vmatpush.bf16.msra.mxu0 0
        %742 = vmatpush.bf16.msra.mxu0 0
        %743 = vmatpush.bf16.msra.mxu0 0
        %744 = vmatpush.bf16.msra.mxu0 0
        %745 = vmatpush.bf16.msra.mxu0 0
        %746 = vmatpush.bf16.msra.mxu0 0
        %747 = vmatpush.bf16.msra.mxu0 0
        %748 = vmatpush.bf16.msra.mxu0 %v690
        %749 = vmatmul.bf16.gmra.mxu0 %v701
        %v750 = vpop.f32.mrf.mxu0
        %v751 = vadd.f32 %v722, %v750
        %v752 = vpop.f32.mrf.mxu0
        %v753 = vadd.f32 %v724, %v752
        %754 = vmatmul.bf16.gmra.mxu0 %v704
        %v755 = vpop.f32.mrf.mxu0
        %v756 = vadd.f32 %v727, %v755
        %v757 = vpop.f32.mrf.mxu0
        %v758 = vadd.f32 %v729, %v757
        %759 = vmatmul.bf16.gmra.mxu0 %v707
        %v760 = vpop.f32.mrf.mxu0
        %v761 = vadd.f32 %v732, %v760
        %v762 = vpop.f32.mrf.mxu0
        %v763 = vadd.f32 %v734, %v762
        %764 = vmatmul.bf16.gmra.mxu0 %v710
        %v765 = vpop.f32.mrf.mxu0
        %v766 = vadd.f32 %v737, %v765
        %v767 = vpop.f32.mrf.mxu0
        %v768 = vadd.f32 %v739, %v767
        %769 = vdwg.mxu0
        %v770 = vmax.f32 %v751, 0.0
        %v771 = vmax.f32 %v753, 0.0
        %v772 = vmax.f32 %v756, 0.0
        %v773 = vmax.f32 %v758, 0.0
        %v774 = vmax.f32 %v761, 0.0
        %v775 = vmax.f32 %v763, 0.0
        %v776 = vmax.f32 %v766, 0.0
        %v777 = vmax.f32 %v768, 0.0
        %v786 = vrot.slane %v770, 2
        %v787 = vrot.slane %v770, 4
        %v788 = vrot.slane %v770, 6
        %v789 = vrot.slane %v771, 2
        %v790 = vrot.slane %v771, 4
        %v791 = vrot.slane %v771, 6
        %v792 = vrot.slane %v772, 2
        %v793 = vrot.slane %v772, 4
        %v794 = vrot.slane %v772, 6
        %v795 = vrot.slane %v773, 2
        %v796 = vrot.slane %v773, 4
        %v797 = vrot.slane %v773, 6
        %v798 = vrot.slane %v774, 2
        %v799 = vrot.slane %v774, 4
        %v800 = vrot.slane %v774, 6
        %v801 = vrot.slane %v775, 2
        %v802 = vrot.slane %v775, 4
        %v803 = vrot.slane %v775, 6
        %v804 = vrot.slane %v776, 2
        %v805 = vrot.slane %v776, 4
        %v806 = vrot.slane %v776, 6
        %v807 = vrot.slane %v777, 2
        %v808 = vrot.slane %v777, 4
        %v809 = vrot.slane %v777, 6
        %v834 = vrot.slane %v770, 7
        %v835 = vrot.slane %v834, 2
        %v836 = vrot.slane %v786, 7
        %v837 = vrot.slane %v836, 2
        %v838 = vrot.slane %v787, 7
        %v839 = vrot.slane %v838, 2
        %v840 = vrot.slane %v788, 7
        %v841 = vrot.slane %v840, 2
        %v842 = vrot.slane %v771, 7
        %v843 = vrot.slane %v842, 2
        %v844 = vrot.slane %v789, 7
        %v845 = vrot.slane %v844, 2
        %v846 = vrot.slane %v790, 7
        %v847 = vrot.slane %v846, 2
        %v848 = vrot.slane %v791, 7
        %v849 = vrot.slane %v848, 2
        %v850 = vrot.slane %v772, 7
        %v851 = vrot.slane %v850, 2
        %v852 = vrot.slane %v792, 7
        %v853 = vrot.slane %v852, 2
        %v854 = vrot.slane %v793, 7
        %v855 = vrot.slane %v854, 2
        %v856 = vrot.slane %v794, 7
        %v857 = vrot.slane %v856, 2
        %v858 = vrot.slane %v773, 7
        %v859 = vrot.slane %v858, 2
        %v860 = vrot.slane %v795, 7
        %v861 = vrot.slane %v860, 2
        %v862 = vrot.slane %v796, 7
        %v863 = vrot.slane %v862, 2
        %v864 = vrot.slane %v797, 7
        %v865 = vrot.slane %v864, 2
        %v866 = vrot.slane %v774, 7
        %v867 = vrot.slane %v866, 2
        %v868 = vrot.slane %v798, 7
        %v869 = vrot.slane %v868, 2
        %v870 = vrot.slane %v799, 7
        %v871 = vrot.slane %v870, 2
        %v872 = vrot.slane %v800, 7
        %v873 = vrot.slane %v872, 2
        %v874 = vrot.slane %v775, 7
        %v875 = vrot.slane %v874, 2
        %v876 = vrot.slane %v801, 7
        %v877 = vrot.slane %v876, 2
        %v878 = vrot.slane %v802, 7
        %v879 = vrot.slane %v878, 2
        %v880 = vrot.slane %v803, 7
        %v881 = vrot.slane %v880, 2
        %v882 = vrot.slane %v776, 7
        %v883 = vrot.slane %v882, 2
        %v884 = vrot.slane %v804, 7
        %v885 = vrot.slane %v884, 2
        %v886 = vrot.slane %v805, 7
        %v887 = vrot.slane %v886, 2
        %v888 = vrot.slane %v806, 7
        %v889 = vrot.slane %v888, 2
        %v890 = vrot.slane %v777, 7
        %v891 = vrot.slane %v890, 2
        %v892 = vrot.slane %v807, 7
        %v893 = vrot.slane %v892, 2
        %v894 = vrot.slane %v808, 7
        %v895 = vrot.slane %v894, 2
        %v896 = vrot.slane %v809, 7
        %v897 = vrot.slane %v896, 2
        %v930 = vmax.f32 %v770, %v835
        %v931 = vmax.f32 %v786, %v837
        %v932 = vmax.f32 %v787, %v839
        %v933 = vmax.f32 %v788, %v841
        %v934 = vmax.f32 %v771, %v843
        %v935 = vmax.f32 %v789, %v845
        %v936 = vmax.f32 %v790, %v847
        %v937 = vmax.f32 %v791, %v849
        %v938 = vmax.f32 %v772, %v851
        %v939 = vmax.f32 %v792, %v853
        %v940 = vmax.f32 %v793, %v855
        %v941 = vmax.f32 %v794, %v857
        %v942 = vmax.f32 %v773, %v859
        %v943 = vmax.f32 %v795, %v861
        %v944 = vmax.f32 %v796, %v863
        %v945 = vmax.f32 %v797, %v865
        %v946 = vmax.f32 %v774, %v867
        %v947 = vmax.f32 %v798, %v869
        %v948 = vmax.f32 %v799, %v871
        %v949 = vmax.f32 %v800, %v873
        %v950 = vmax.f32 %v775, %v875
        %v951 = vmax.f32 %v801, %v877
        %v952 = vmax.f32 %v802, %v879
        %v953 = vmax.f32 %v803, %v881
        %v954 = vmax.f32 %v776, %v883
        %v955 = vmax.f32 %v804, %v885
        %v956 = vmax.f32 %v805, %v887
        %v957 = vmax.f32 %v806, %v889
        %v958 = vmax.f32 %v777, %v891
        %v959 = vmax.f32 %v807, %v893
        %v960 = vmax.f32 %v808, %v895
        %v961 = vmax.f32 %v809, %v897
        %994 = vrot.lane.b32.xlu0 %v930, 64
        %v995 = vpop.permute.xlu0 %994
        %996 = vrot.lane.b32.xlu0 %v931, 64
        %v997 = vpop.permute.xlu0 %996
        %998 = vrot.lane.b32.xlu0 %v932, 64
        %v999 = vpop.permute.xlu0 %998
        %1000 = vrot.lane.b32.xlu0 %v933, 64
        %v1001 = vpop.permute.xlu0 %1000
        %1002 = vrot.lane.b32.xlu0 %v934, 64
        %v1003 = vpop.permute.xlu0 %1002
        %1004 = vrot.lane.b32.xlu0 %v935, 64
        %v1005 = vpop.permute.xlu0 %1004
        %1006 = vrot.lane.b32.xlu0 %v936, 64
        %v1007 = vpop.permute.xlu0 %1006
        %1008 = vrot.lane.b32.xlu0 %v937, 64
        %v1009 = vpop.permute.xlu0 %1008
        %1010 = vrot.lane.b32.xlu0 %v938, 64
        %v1011 = vpop.permute.xlu0 %1010
        %1012 = vrot.lane.b32.xlu0 %v939, 64
        %v1013 = vpop.permute.xlu0 %1012
        %1014 = vrot.lane.b32.xlu0 %v940, 64
        %v1015 = vpop.permute.xlu0 %1014
        %1016 = vrot.lane.b32.xlu0 %v941, 64
        %v1017 = vpop.permute.xlu0 %1016
        %1018 = vrot.lane.b32.xlu0 %v942, 64
        %v1019 = vpop.permute.xlu0 %1018
        %1020 = vrot.lane.b32.xlu0 %v943, 64
        %v1021 = vpop.permute.xlu0 %1020
        %1022 = vrot.lane.b32.xlu0 %v944, 64
        %v1023 = vpop.permute.xlu0 %1022
        %1024 = vrot.lane.b32.xlu0 %v945, 64
        %v1025 = vpop.permute.xlu0 %1024
        %1026 = vrot.lane.b32.xlu0 %v946, 64
        %v1027 = vpop.permute.xlu0 %1026
        %1028 = vrot.lane.b32.xlu0 %v947, 64
        %v1029 = vpop.permute.xlu0 %1028
        %1030 = vrot.lane.b32.xlu0 %v948, 64
        %v1031 = vpop.permute.xlu0 %1030
        %1032 = vrot.lane.b32.xlu0 %v949, 64
        %v1033 = vpop.permute.xlu0 %1032
        %1034 = vrot.lane.b32.xlu0 %v950, 64
        %v1035 = vpop.permute.xlu0 %1034
        %1036 = vrot.lane.b32.xlu0 %v951, 64
        %v1037 = vpop.permute.xlu0 %1036
        %1038 = vrot.lane.b32.xlu0 %v952, 64
        %v1039 = vpop.permute.xlu0 %1038
        %1040 = vrot.lane.b32.xlu0 %v953, 64
        %v1041 = vpop.permute.xlu0 %1040
        %1042 = vrot.lane.b32.xlu0 %v954, 64
        %v1043 = vpop.permute.xlu0 %1042
        %1044 = vrot.lane.b32.xlu0 %v955, 64
        %v1045 = vpop.permute.xlu0 %1044
        %1046 = vrot.lane.b32.xlu0 %v956, 64
        %v1047 = vpop.permute.xlu0 %1046
        %1048 = vrot.lane.b32.xlu0 %v957, 64
        %v1049 = vpop.permute.xlu0 %1048
        %1050 = vrot.lane.b32.xlu0 %v958, 64
        %v1051 = vpop.permute.xlu0 %1050
        %1052 = vrot.lane.b32.xlu0 %v959, 64
        %v1053 = vpop.permute.xlu0 %1052
        %1054 = vrot.lane.b32.xlu0 %v960, 64
        %v1055 = vpop.permute.xlu0 %1054
        %1056 = vrot.lane.b32.xlu0 %v961, 64
        %v1057 = vpop.permute.xlu0 %1056
        %v1090 = vmax.f32 %v930, %v995
        %v1091 = vmax.f32 %v931, %v997
        %v1092 = vmax.f32 %v932, %v999
        %v1093 = vmax.f32 %v933, %v1001
        %v1094 = vmax.f32 %v934, %v1003
        %v1095 = vmax.f32 %v935, %v1005
        %v1096 = vmax.f32 %v936, %v1007
        %v1097 = vmax.f32 %v937, %v1009
        %v1098 = vmax.f32 %v938, %v1011
        %v1099 = vmax.f32 %v939, %v1013
        %v1100 = vmax.f32 %v940, %v1015
        %v1101 = vmax.f32 %v941, %v1017
        %v1102 = vmax.f32 %v942, %v1019
        %v1103 = vmax.f32 %v943, %v1021
        %v1104 = vmax.f32 %v944, %v1023
        %v1105 = vmax.f32 %v945, %v1025
        %v1106 = vmax.f32 %v946, %v1027
        %v1107 = vmax.f32 %v947, %v1029
        %v1108 = vmax.f32 %v948, %v1031
        %v1109 = vmax.f32 %v949, %v1033
        %v1110 = vmax.f32 %v950, %v1035
        %v1111 = vmax.f32 %v951, %v1037
        %v1112 = vmax.f32 %v952, %v1039
        %v1113 = vmax.f32 %v953, %v1041
        %v1114 = vmax.f32 %v954, %v1043
        %v1115 = vmax.f32 %v955, %v1045
        %v1116 = vmax.f32 %v956, %v1047
        %v1117 = vmax.f32 %v957, %v1049
        %v1118 = vmax.f32 %v958, %v1051
        %v1119 = vmax.f32 %v959, %v1053
        %v1120 = vmax.f32 %v960, %v1055
        %v1121 = vmax.f32 %v961, %v1057
        %v1154 = vperm.slane %v1090, 0
        %v1155 = vperm.slane %v1091, 0
        %v1156 = vperm.slane %v1092, 0
        %v1157 = vperm.slane %v1093, 0
        %v1158 = vperm.slane %v1094, 0
        %v1159 = vperm.slane %v1095, 0
        %v1160 = vperm.slane %v1096, 0
        %v1161 = vperm.slane %v1097, 0
        %v1162 = vperm.slane %v1098, 0
        %v1163 = vperm.slane %v1099, 0
        %v1164 = vperm.slane %v1100, 0
        %v1165 = vperm.slane %v1101, 0
        %v1166 = vperm.slane %v1102, 0
        %v1167 = vperm.slane %v1103, 0
        %v1168 = vperm.slane %v1104, 0
        %v1169 = vperm.slane %v1105, 0
        %v1170 = vperm.slane %v1106, 0
        %v1171 = vperm.slane %v1107, 0
        %v1172 = vperm.slane %v1108, 0
        %v1173 = vperm.slane %v1109, 0
        %v1174 = vperm.slane %v1110, 0
        %v1175 = vperm.slane %v1111, 0
        %v1176 = vperm.slane %v1112, 0
        %v1177 = vperm.slane %v1113, 0
        %v1178 = vperm.slane %v1114, 0
        %v1179 = vperm.slane %v1115, 0
        %v1180 = vperm.slane %v1116, 0
        %v1181 = vperm.slane %v1117, 0
        %v1182 = vperm.slane %v1118, 0
        %v1183 = vperm.slane %v1119, 0
        %v1184 = vperm.slane %v1120, 0
        %v1185 = vperm.slane %v1121, 0
        %vm1186 = vcmask 1041409
        %v1187 = vsel %vm1186, %v1155, %v1154
        %vm1188 = vcmask 1042434
        %v1189 = vsel %vm1188, %v1156, %v1187
        %vm1190 = vcmask 1043459
        %v1191 = vsel %vm1190, %v1157, %v1189
        %vm1192 = vcmask 1044484
        %v1193 = vsel %vm1192, %v1158, %v1191
        %vm1194 = vcmask 1045509
        %v1195 = vsel %vm1194, %v1159, %v1193
        %vm1196 = vcmask 1046534
        %v1197 = vsel %vm1196, %v1160, %v1195
        %vm1198 = vcmask 1047559
        %v1199 = vsel %vm1198, %v1161, %v1197
        %v1200 = vsel %vm1186, %v1163, %v1162
        %v1201 = vsel %vm1188, %v1164, %v1200
        %v1202 = vsel %vm1190, %v1165, %v1201
        %v1203 = vsel %vm1192, %v1166, %v1202
        %v1204 = vsel %vm1194, %v1167, %v1203
        %v1205 = vsel %vm1196, %v1168, %v1204
        %v1206 = vsel %vm1198, %v1169, %v1205
        %v1207 = vsel %vm1186, %v1171, %v1170
        %v1208 = vsel %vm1188, %v1172, %v1207
        %v1209 = vsel %vm1190, %v1173, %v1208
        %v1210 = vsel %vm1192, %v1174, %v1209
        %v1211 = vsel %vm1194, %v1175, %v1210
        %v1212 = vsel %vm1196, %v1176, %v1211
        %v1213 = vsel %vm1198, %v1177, %v1212
        %v1214 = vsel %vm1186, %v1179, %v1178
        %v1215 = vsel %vm1188, %v1180, %v1214
        %v1216 = vsel %vm1190, %v1181, %v1215
        %v1217 = vsel %vm1192, %v1182, %v1216
        %v1218 = vsel %vm1194, %v1183, %v1217
        %v1219 = vsel %vm1196, %v1184, %v1218
        %v1220 = vsel %vm1198, %v1185, %v1219
        %1221 = vrot.lane.b32.xlu0 %v1199, 64
        %v1222 = vpop.permute.xlu0 %1221
        %1223 = vrot.lane.b32.xlu0 %v1206, 64
        %v1224 = vpop.permute.xlu0 %1223
        %1225 = vrot.lane.b32.xlu0 %v1213, 64
        %v1226 = vpop.permute.xlu0 %1225
        %1227 = vrot.lane.b32.xlu0 %v1220, 64
        %v1228 = vpop.permute.xlu0 %1227
        %vm1233 = vcmask 1048064
        %1234 = vst.msk [vmem:[#allocation3] sm:$0xff] %vm1233, %v1222
        %1235 = vst.msk [vmem:[#allocation3 + $0x10] sm:$0xff] %vm1233, %v1224
        %1236 = vst.msk [vmem:[#allocation3 + $0x20] sm:$0xff] %vm1233, %v1226
        %1237 = vst.msk [vmem:[#allocation3 + $0x30] sm:$0xff] %vm1233, %v1228
        %v1238 = vsel %vm1188, %v1155, %v1154
        %v1239 = vsel %vm1190, %v1156, %v1238
        %v1240 = vsel %vm1192, %v1157, %v1239
        %v1241 = vsel %vm1194, %v1158, %v1240
        %v1242 = vsel %vm1196, %v1159, %v1241
        %v1243 = vsel %vm1198, %v1160, %v1242
        %v1244 = vsel %vm1186, %v1162, %v1161
        %v1245 = vsel %vm1188, %v1163, %v1244
        %v1246 = vsel %vm1190, %v1164, %v1245
        %v1247 = vsel %vm1192, %v1165, %v1246
        %v1248 = vsel %vm1194, %v1166, %v1247
        %v1249 = vsel %vm1196, %v1167, %v1248
        %v1250 = vsel %vm1198, %v1168, %v1249
        %v1251 = vsel %vm1186, %v1170, %v1169
        %v1252 = vsel %vm1188, %v1171, %v1251
        %v1253 = vsel %vm1190, %v1172, %v1252
        %v1254 = vsel %vm1192, %v1173, %v1253
        %v1255 = vsel %vm1194, %v1174, %v1254
        %v1256 = vsel %vm1196, %v1175, %v1255
        %v1257 = vsel %vm1198, %v1176, %v1256
        %v1258 = vsel %vm1186, %v1178, %v1177
        %v1259 = vsel %vm1188, %v1179, %v1258
        %v1260 = vsel %vm1190, %v1180, %v1259
        %v1261 = vsel %vm1192, %v1181, %v1260
        %v1262 = vsel %vm1194, %v1182, %v1261
        %v1263 = vsel %vm1196, %v1183, %v1262
        %v1264 = vsel %vm1198, %v1184, %v1263
        %vm1269 = vcmask 523265
        %1270 = vst.msk [vmem:[#allocation3] sm:$0xfe] %vm1269, %v1243
        %vm1271 = vcmask 523264
        %1272 = vst.msk [vmem:[#allocation3 + $0x10] sm:$0xff] %vm1271, %v1250
        %1273 = vst.msk [vmem:[#allocation3 + $0x20] sm:$0xff] %vm1271, %v1257
        %1274 = vst.msk [vmem:[#allocation3 + $0x30] sm:$0xff] %vm1271, %v1264
        %v1275 = vsel %vm1186, %v1156, %v1155
        %v1276 = vsel %vm1188, %v1157, %v1275
        %v1277 = vsel %vm1190, %v1158, %v1276
        %v1278 = vsel %vm1192, %v1159, %v1277
        %v1279 = vsel %vm1194, %v1160, %v1278
        %v1280 = vsel %vm1196, %v1161, %v1279
        %v1281 = vsel %vm1198, %v1162, %v1280
        %v1282 = vsel %vm1186, %v1164, %v1163
        %v1283 = vsel %vm1188, %v1165, %v1282
        %v1284 = vsel %vm1190, %v1166, %v1283
        %v1285 = vsel %vm1192, %v1167, %v1284
        %v1286 = vsel %vm1194, %v1168, %v1285
        %v1287 = vsel %vm1196, %v1169, %v1286
        %v1288 = vsel %vm1198, %v1170, %v1287
        %v1289 = vsel %vm1186, %v1172, %v1171
        %v1290 = vsel %vm1188, %v1173, %v1289
        %v1291 = vsel %vm1190, %v1174, %v1290
        %v1292 = vsel %vm1192, %v1175, %v1291
        %v1293 = vsel %vm1194, %v1176, %v1292
        %v1294 = vsel %vm1196, %v1177, %v1293
        %v1295 = vsel %vm1198, %v1178, %v1294
        %v1296 = vsel %vm1186, %v1180, %v1179
        %v1297 = vsel %vm1188, %v1181, %v1296
        %v1298 = vsel %vm1190, %v1182, %v1297
        %v1299 = vsel %vm1192, %v1183, %v1298
        %v1300 = vsel %vm1194, %v1184, %v1299
        %v1301 = vsel %vm1196, %v1185, %v1300
        %1306 = vst.msk [vmem:[#allocation3 + $0x8] sm:$0xff] %vm1271, %v1281
        %1307 = vst.msk [vmem:[#allocation3 + $0x18] sm:$0xff] %vm1271, %v1288
        %1308 = vst.msk [vmem:[#allocation3 + $0x28] sm:$0xff] %vm1271, %v1295
        %vm1309 = vcmask 522240
        %1310 = vst.msk [vmem:[#allocation3 + $0x38] sm:$0x7f] %vm1309, %v1301
        %vm1311 = vcmask 516096
        %1312 = vst.msk [vmem:[#allocation3] sm:$0x1] %vm1311, 0.0
        %1313 = vst.msk [vmem:[#allocation3 + $0xf] sm:$0x1] %vm1311, 0.0
        %1314 = vst.msk [vmem:[#allocation3 + $0x10] sm:$0x1] %vm1311, 0.0
        %1315 = vst.msk [vmem:[#allocation3 + $0x1f] sm:$0x1] %vm1311, 0.0
        %1316 = vst.msk [vmem:[#allocation3 + $0x20] sm:$0x1] %vm1311, 0.0
        %1317 = vst.msk [vmem:[#allocation3 + $0x2f] sm:$0x1] %vm1311, 0.0
        %1318 = vst.msk [vmem:[#allocation3 + $0x30] sm:$0x1] %vm1311, 0.0
        %1319 = vst.msk [vmem:[#allocation3 + $0x3f] sm:$0x1] %vm1311, 0.0
        %v1320 = vld [vmem:[#allocation3] sm:$0xff]
        %v1321 = vld [vmem:[#allocation3 + $0x8] sm:$0xff]
        %v1322 = vld [vmem:[#allocation3 + $0x10] sm:$0xff]
        %v1323 = vld [vmem:[#allocation3 + $0x18] sm:$0xff]
        %v1324 = vld [vmem:[#allocation3 + $0x20] sm:$0xff]
        %v1325 = vld [vmem:[#allocation3 + $0x28] sm:$0xff]
        %v1326 = vld [vmem:[#allocation3 + $0x30] sm:$0xff]
        %v1327 = vld [vmem:[#allocation3 + $0x38] sm:$0xff]
        %v1328 = vpack.c.bf16 %v1322, %v1320
        %v1329 = vpack.c.bf16 %v1323, %v1321
        %v1330 = vpack.c.bf16 %v1326, %v1324
        %v1331 = vpack.c.bf16 %v1327, %v1325
        %v1332 = vld [vmem:[%s3] sm:$0xf]
        %v1333 = vld [vmem:[%s3 + $0x4] sm:$0xf]
        %v1334 = vld [vmem:[%s3 + $0x8] sm:$0xf]
        %v1335 = vld [vmem:[%s3 + $0xc] sm:$0xf]
        %v1336 = vld [vmem:[%s3 + $0x10] sm:$0xf]
        %v1337 = vld [vmem:[%s3 + $0x14] sm:$0xf]
        %v1338 = vld [vmem:[%s3 + $0x18] sm:$0xf]
        %v1339 = vld [vmem:[%s3 + $0x1c] sm:$0xf]
        %v1340 = vld [vmem:[%s3 + $0x20] sm:$0xf]
        %v1341 = vld [vmem:[%s3 + $0x24] sm:$0xf]
        %v1342 = vld [vmem:[%s3 + $0x28] sm:$0xf]
        %v1343 = vld [vmem:[%s3 + $0x2c] sm:$0xf]
        %v1344 = vld [vmem:[%s3 + $0x30] sm:$0xf]
        %v1345 = vld [vmem:[%s3 + $0x34] sm:$0xf]
        %v1346 = vld [vmem:[%s3 + $0x38] sm:$0xf]
        %v1347 = vld [vmem:[%s3 + $0x3c] sm:$0xf]
        %v1348 = vld [vmem:[%s3 + $0x40] sm:$0xf]
        %v1349 = vld [vmem:[%s3 + $0x44] sm:$0xf]
        %v1350 = vld [vmem:[%s3 + $0x48] sm:$0xf]
        %v1351 = vld [vmem:[%s3 + $0x4c] sm:$0xf]
        %v1352 = vld [vmem:[%s3 + $0x50] sm:$0xf]
        %v1353 = vld [vmem:[%s3 + $0x54] sm:$0xf]
        %v1354 = vld [vmem:[%s3 + $0x58] sm:$0xf]
        %v1355 = vld [vmem:[%s3 + $0x5c] sm:$0xf]
        %v1356 = vld [vmem:[%s4] sm:$0x1]
        %v1358 = vperm.slane %v1356, 0
        %v1384 = vunpack.c.l.b16 %v1332
        %v1385 = vunpack.c.l.b16 %v1333
        %v1386 = vunpack.c.l.b16 %v1334
        %v1387 = vunpack.c.l.b16 %v1335
        %v1388 = vunpack.c.l.b16 %v1336
        %v1389 = vunpack.c.l.b16 %v1337
        %v1390 = vunpack.c.l.b16 %v1338
        %v1391 = vunpack.c.l.b16 %v1339
        %v1392 = vunpack.c.l.b16 %v1340
        %v1393 = vunpack.c.l.b16 %v1341
        %v1394 = vunpack.c.l.b16 %v1342
        %v1395 = vunpack.c.l.b16 %v1343
        %v1396 = vunpack.c.l.b16 %v1344
        %v1397 = vunpack.c.l.b16 %v1345
        %v1398 = vunpack.c.l.b16 %v1346
        %v1399 = vunpack.c.l.b16 %v1347
        %v1400 = vunpack.c.l.b16 %v1348
        %v1401 = vunpack.c.l.b16 %v1349
        %v1402 = vunpack.c.l.b16 %v1350
        %v1403 = vunpack.c.l.b16 %v1351
        %v1404 = vunpack.c.l.b16 %v1352
        %v1405 = vunpack.c.l.b16 %v1353
        %v1406 = vunpack.c.l.b16 %v1354
        %v1407 = vunpack.c.l.b16 %v1355
        %v1408 = vpack.c.b16 %v1385, %v1384
        %v1409 = vpack.c.b16 %v1387, %v1386
        %v1410 = vpack.c.b16 %v1389, %v1388
        %v1411 = vpack.c.b16 %v1391, %v1390
        %v1412 = vpack.c.b16 %v1393, %v1392
        %v1413 = vpack.c.b16 %v1395, %v1394
        %v1414 = vpack.c.b16 %v1397, %v1396
        %v1415 = vpack.c.b16 %v1399, %v1398
        %v1416 = vpack.c.b16 %v1401, %v1400
        %v1417 = vpack.c.b16 %v1403, %v1402
        %v1418 = vpack.c.b16 %v1405, %v1404
        %v1419 = vpack.c.b16 %v1407, %v1406
        %v1433 = vsel %vm1271, %v1329, 0
        %v1436 = vsel %vm1271, %v1331, 0
        %1438 = vmatpush.bf16.msra.mxu0 %v1415
        %1439 = vmatpush.bf16.msra.mxu0 %v1414
        %1440 = vmatpush.bf16.msra.mxu0 %v1413
        %1441 = vmatpush.bf16.msra.mxu0 %v1412
        %1442 = vmatpush.bf16.msra.mxu0 %v1411
        %1443 = vmatpush.bf16.msra.mxu0 %v1410
        %1444 = vmatpush.bf16.msra.mxu0 %v1409
        %1445 = vmatpush.bf16.msra.mxu0 %v1408
        %1446 = vmatmul.bf16.gmra.mxu0 %v1328
        %v1447 = vpop.f32.mrf.mxu0
        %v1448 = vadd.f32 %v1358, %v1447
        %v1449 = vpop.f32.mrf.mxu0
        %v1450 = vadd.f32 %v1358, %v1449
        %1451 = vmatmul.bf16.gmra.mxu0 %v1330
        %v1452 = vpop.f32.mrf.mxu0
        %v1453 = vadd.f32 %v1358, %v1452
        %v1454 = vpop.f32.mrf.mxu0
        %v1455 = vadd.f32 %v1358, %v1454
        %1456 = vdwg.mxu0
        %1457 = vmatpush.bf16.msra.mxu0 0
        %1458 = vmatpush.bf16.msra.mxu0 0
        %1459 = vmatpush.bf16.msra.mxu0 0
        %1460 = vmatpush.bf16.msra.mxu0 0
        %1461 = vmatpush.bf16.msra.mxu0 %v1419
        %1462 = vmatpush.bf16.msra.mxu0 %v1418
        %1463 = vmatpush.bf16.msra.mxu0 %v1417
        %1464 = vmatpush.bf16.msra.mxu0 %v1416
        %1465 = vmatmul.bf16.gmra.mxu0 %v1433
        %v1466 = vpop.f32.mrf.mxu0
        %v1467 = vadd.f32 %v1448, %v1466
        %v1468 = vpop.f32.mrf.mxu0
        %v1469 = vadd.f32 %v1450, %v1468
        %1470 = vmatmul.bf16.gmra.mxu0 %v1436
        %v1471 = vpop.f32.mrf.mxu0
        %v1472 = vadd.f32 %v1453, %v1471
        %v1473 = vpop.f32.mrf.mxu0
        %v1474 = vadd.f32 %v1455, %v1473
        %1475 = vdwg.mxu0
        %v1476 = vmax.f32 %v1467, 0.0
        %v1477 = vmax.f32 %v1469, 0.0
        %v1478 = vmax.f32 %v1472, 0.0
        %v1479 = vmax.f32 %v1474, 0.0
        %v1484 = vrot.slane %v1476, 2
        %v1485 = vrot.slane %v1476, 4
        %v1486 = vrot.slane %v1476, 6
        %v1487 = vrot.slane %v1477, 2
        %v1488 = vrot.slane %v1477, 4
        %v1489 = vrot.slane %v1477, 6
        %v1490 = vrot.slane %v1478, 2
        %v1491 = vrot.slane %v1478, 4
        %v1492 = vrot.slane %v1478, 6
        %v1493 = vrot.slane %v1479, 2
        %v1494 = vrot.slane %v1479, 4
        %v1495 = vrot.slane %v1479, 6
        %v1508 = vrot.slane %v1476, 7
        %v1509 = vrot.slane %v1508, 2
        %v1510 = vrot.slane %v1484, 7
        %v1511 = vrot.slane %v1510, 2
        %v1512 = vrot.slane %v1485, 7
        %v1513 = vrot.slane %v1512, 2
        %v1514 = vrot.slane %v1486, 7
        %v1515 = vrot.slane %v1514, 2
        %v1516 = vrot.slane %v1477, 7
        %v1517 = vrot.slane %v1516, 2
        %v1518 = vrot.slane %v1487, 7
        %v1519 = vrot.slane %v1518, 2
        %v1520 = vrot.slane %v1488, 7
        %v1521 = vrot.slane %v1520, 2
        %v1522 = vrot.slane %v1489, 7
        %v1523 = vrot.slane %v1522, 2
        %v1524 = vrot.slane %v1478, 7
        %v1525 = vrot.slane %v1524, 2
        %v1526 = vrot.slane %v1490, 7
        %v1527 = vrot.slane %v1526, 2
        %v1528 = vrot.slane %v1491, 7
        %v1529 = vrot.slane %v1528, 2
        %v1530 = vrot.slane %v1492, 7
        %v1531 = vrot.slane %v1530, 2
        %v1532 = vrot.slane %v1479, 7
        %v1533 = vrot.slane %v1532, 2
        %v1534 = vrot.slane %v1493, 7
        %v1535 = vrot.slane %v1534, 2
        %v1536 = vrot.slane %v1494, 7
        %v1537 = vrot.slane %v1536, 2
        %v1538 = vrot.slane %v1495, 7
        %v1539 = vrot.slane %v1538, 2
        %v1556 = vmax.f32 %v1476, %v1509
        %v1557 = vmax.f32 %v1484, %v1511
        %v1558 = vmax.f32 %v1485, %v1513
        %v1559 = vmax.f32 %v1486, %v1515
        %v1560 = vmax.f32 %v1477, %v1517
        %v1561 = vmax.f32 %v1487, %v1519
        %v1562 = vmax.f32 %v1488, %v1521
        %v1563 = vmax.f32 %v1489, %v1523
        %v1564 = vmax.f32 %v1478, %v1525
        %v1565 = vmax.f32 %v1490, %v1527
        %v1566 = vmax.f32 %v1491, %v1529
        %v1567 = vmax.f32 %v1492, %v1531
        %v1568 = vmax.f32 %v1479, %v1533
        %v1569 = vmax.f32 %v1493, %v1535
        %v1570 = vmax.f32 %v1494, %v1537
        %v1571 = vmax.f32 %v1495, %v1539
        %1588 = vrot.lane.b32.xlu0 %v1556, 64
        %v1589 = vpop.permute.xlu0 %1588
        %1590 = vrot.lane.b32.xlu0 %v1557, 64
        %v1591 = vpop.permute.xlu0 %1590
        %1592 = vrot.lane.b32.xlu0 %v1558, 64
        %v1593 = vpop.permute.xlu0 %1592
        %1594 = vrot.lane.b32.xlu0 %v1559, 64
        %v1595 = vpop.permute.xlu0 %1594
        %1596 = vrot.lane.b32.xlu0 %v1560, 64
        %v1597 = vpop.permute.xlu0 %1596
        %1598 = vrot.lane.b32.xlu0 %v1561, 64
        %v1599 = vpop.permute.xlu0 %1598
        %1600 = vrot.lane.b32.xlu0 %v1562, 64
        %v1601 = vpop.permute.xlu0 %1600
        %1602 = vrot.lane.b32.xlu0 %v1563, 64
        %v1603 = vpop.permute.xlu0 %1602
        %1604 = vrot.lane.b32.xlu0 %v1564, 64
        %v1605 = vpop.permute.xlu0 %1604
        %1606 = vrot.lane.b32.xlu0 %v1565, 64
        %v1607 = vpop.permute.xlu0 %1606
        %1608 = vrot.lane.b32.xlu0 %v1566, 64
        %v1609 = vpop.permute.xlu0 %1608
        %1610 = vrot.lane.b32.xlu0 %v1567, 64
        %v1611 = vpop.permute.xlu0 %1610
        %1612 = vrot.lane.b32.xlu0 %v1568, 64
        %v1613 = vpop.permute.xlu0 %1612
        %1614 = vrot.lane.b32.xlu0 %v1569, 64
        %v1615 = vpop.permute.xlu0 %1614
        %1616 = vrot.lane.b32.xlu0 %v1570, 64
        %v1617 = vpop.permute.xlu0 %1616
        %1618 = vrot.lane.b32.xlu0 %v1571, 64
        %v1619 = vpop.permute.xlu0 %1618
        %v1636 = vmax.f32 %v1556, %v1589
        %v1637 = vmax.f32 %v1557, %v1591
        %v1638 = vmax.f32 %v1558, %v1593
        %v1639 = vmax.f32 %v1559, %v1595
        %v1640 = vmax.f32 %v1560, %v1597
        %v1641 = vmax.f32 %v1561, %v1599
        %v1642 = vmax.f32 %v1562, %v1601
        %v1643 = vmax.f32 %v1563, %v1603
        %v1644 = vmax.f32 %v1564, %v1605
        %v1645 = vmax.f32 %v1565, %v1607
        %v1646 = vmax.f32 %v1566, %v1609
        %v1647 = vmax.f32 %v1567, %v1611
        %v1648 = vmax.f32 %v1568, %v1613
        %v1649 = vmax.f32 %v1569, %v1615
        %v1650 = vmax.f32 %v1570, %v1617
        %v1651 = vmax.f32 %v1571, %v1619
        %v1668 = vperm.slane %v1636, 0
        %v1669 = vperm.slane %v1637, 0
        %v1670 = vperm.slane %v1638, 0
        %v1671 = vperm.slane %v1639, 0
        %v1672 = vperm.slane %v1640, 0
        %v1673 = vperm.slane %v1641, 0
        %v1674 = vperm.slane %v1642, 0
        %v1675 = vperm.slane %v1643, 0
        %v1676 = vperm.slane %v1644, 0
        %v1677 = vperm.slane %v1645, 0
        %v1678 = vperm.slane %v1646, 0
        %v1679 = vperm.slane %v1647, 0
        %v1680 = vperm.slane %v1648, 0
        %v1681 = vperm.slane %v1649, 0
        %v1682 = vperm.slane %v1650, 0
        %v1683 = vperm.slane %v1651, 0
        %v1684 = vsel %vm1186, %v1669, %v1668
        %v1685 = vsel %vm1188, %v1670, %v1684
        %v1686 = vsel %vm1190, %v1671, %v1685
        %v1687 = vsel %vm1192, %v1672, %v1686
        %v1688 = vsel %vm1194, %v1673, %v1687
        %v1689 = vsel %vm1196, %v1674, %v1688
        %v1690 = vsel %vm1198, %v1675, %v1689
        %v1691 = vsel %vm1186, %v1677, %v1676
        %v1692 = vsel %vm1188, %v1678, %v1691
        %v1693 = vsel %vm1190, %v1679, %v1692
        %v1694 = vsel %vm1192, %v1680, %v1693
        %v1695 = vsel %vm1194, %v1681, %v1694
        %v1696 = vsel %vm1196, %v1682, %v1695
        %v1697 = vsel %vm1198, %v1683, %v1696
        %1698 = vrot.lane.b32.xlu0 %v1690, 64
        %v1699 = vpop.permute.xlu0 %1698
        %1700 = vrot.lane.b32.xlu0 %v1697, 64
        %v1701 = vpop.permute.xlu0 %1700
        %1704 = vst.msk [vmem:[#allocation4] sm:$0xff] %vm1233, %v1699
        %1705 = vst.msk [vmem:[#allocation4 + $0x10] sm:$0xff] %vm1233, %v1701
        %v1706 = vsel %vm1188, %v1669, %v1668
        %v1707 = vsel %vm1190, %v1670, %v1706
        %v1708 = vsel %vm1192, %v1671, %v1707
        %v1709 = vsel %vm1194, %v1672, %v1708
        %v1710 = vsel %vm1196, %v1673, %v1709
        %v1711 = vsel %vm1198, %v1674, %v1710
        %v1712 = vsel %vm1186, %v1676, %v1675
        %v1713 = vsel %vm1188, %v1677, %v1712
        %v1714 = vsel %vm1190, %v1678, %v1713
        %v1715 = vsel %vm1192, %v1679, %v1714
        %v1716 = vsel %vm1194, %v1680, %v1715
        %v1717 = vsel %vm1196, %v1681, %v1716
        %v1718 = vsel %vm1198, %v1682, %v1717
        %1721 = vst.msk [vmem:[#allocation4] sm:$0xfe] %vm1269, %v1711
        %1722 = vst.msk [vmem:[#allocation4 + $0x10] sm:$0xff] %vm1271, %v1718
        %v1723 = vsel %vm1186, %v1670, %v1669
        %v1724 = vsel %vm1188, %v1671, %v1723
        %v1725 = vsel %vm1190, %v1672, %v1724
        %v1726 = vsel %vm1192, %v1673, %v1725
        %v1727 = vsel %vm1194, %v1674, %v1726
        %v1728 = vsel %vm1196, %v1675, %v1727
        %v1729 = vsel %vm1198, %v1676, %v1728
        %v1730 = vsel %vm1186, %v1678, %v1677
        %v1731 = vsel %vm1188, %v1679, %v1730
        %v1732 = vsel %vm1190, %v1680, %v1731
        %v1733 = vsel %vm1192, %v1681, %v1732
        %v1734 = vsel %vm1194, %v1682, %v1733
        %v1735 = vsel %vm1196, %v1683, %v1734
        %1738 = vst.msk [vmem:[#allocation4 + $0x8] sm:$0xff] %vm1271, %v1729
        %1739 = vst.msk [vmem:[#allocation4 + $0x18] sm:$0x7f] %vm1309, %v1735
        %1740 = vst.msk [vmem:[#allocation4] sm:$0x1] %vm1311, 0.0
        %1741 = vst.msk [vmem:[#allocation4 + $0xb] sm:$0x1] %vm1311, 0.0
        %1742 = vst.msk [vmem:[#allocation4 + $0x4] sm:$0x1] %vm1311, 0.0
        %1743 = vst.msk [vmem:[#allocation4 + $0xf] sm:$0x1] %vm1311, 0.0
        %1744 = vst.msk [vmem:[#allocation4 + $0x10] sm:$0x1] %vm1311, 0.0
        %1745 = vst.msk [vmem:[#allocation4 + $0x1b] sm:$0x1] %vm1311, 0.0
        %1746 = vst.msk [vmem:[#allocation4 + $0x14] sm:$0x1] %vm1311, 0.0
        %1747 = vst.msk [vmem:[#allocation4 + $0x1f] sm:$0x1] %vm1311, 0.0
        %v1748 = vld [vmem:[#allocation4] sm:$0xff]
        %v1749 = vld [vmem:[#allocation4 + $0x8] sm:$0xff]
        %v1750 = vld [vmem:[#allocation4 + $0x10] sm:$0xff]
        %v1751 = vld [vmem:[#allocation4 + $0x18] sm:$0xff]
        %v1752 = vpack.c.bf16 %v1750, %v1748
        %v1753 = vpack.c.bf16 %v1751, %v1749
        %v1754 = vld [vmem:[%s5] sm:$0xf]
        %v1755 = vld [vmem:[%s5 + $0x4] sm:$0xf]
        %v1756 = vld [vmem:[%s5 + $0x8] sm:$0xf]
        %v1757 = vld [vmem:[%s5 + $0xc] sm:$0xf]
        %v1758 = vld [vmem:[%s5 + $0x10] sm:$0xf]
        %v1759 = vld [vmem:[%s5 + $0x14] sm:$0xf]
        %v1760 = vld [vmem:[%s5 + $0x18] sm:$0xf]
        %v1761 = vld [vmem:[%s5 + $0x1c] sm:$0xf]
        %v1762 = vld [vmem:[%s5 + $0x20] sm:$0xf]
        %v1763 = vld [vmem:[%s5 + $0x24] sm:$0xf]
        %v1764 = vld [vmem:[%s5 + $0x28] sm:$0xf]
        %v1765 = vld [vmem:[%s5 + $0x2c] sm:$0xf]
        %v1766 = vld [vmem:[%s5 + $0x30] sm:$0xf]
        %v1767 = vld [vmem:[%s5 + $0x34] sm:$0xf]
        %v1768 = vld [vmem:[%s5 + $0x38] sm:$0xf]
        %v1769 = vld [vmem:[%s5 + $0x3c] sm:$0xf]
        %v1770 = vld [vmem:[%s5 + $0x40] sm:$0xf]
        %v1771 = vld [vmem:[%s5 + $0x44] sm:$0xf]
        %v1772 = vld [vmem:[%s5 + $0x48] sm:$0xf]
        %v1773 = vld [vmem:[%s5 + $0x4c] sm:$0xf]
        %v1774 = vld [vmem:[%s5 + $0x50] sm:$0xf]
        %v1775 = vld [vmem:[%s5 + $0x54] sm:$0xf]
        %v1776 = vld [vmem:[%s5 + $0x58] sm:$0xf]
        %v1777 = vld [vmem:[%s5 + $0x5c] sm:$0xf]
        %v1778 = vld [vmem:[%s6] sm:$0x1]
        %v1780 = vperm.slane %v1778, 0
        %v1806 = vunpack.c.l.b16 %v1754
        %v1807 = vunpack.c.l.b16 %v1755
        %v1808 = vunpack.c.l.b16 %v1756
        %v1809 = vunpack.c.l.b16 %v1757
        %v1810 = vunpack.c.l.b16 %v1758
        %v1811 = vunpack.c.l.b16 %v1759
        %v1812 = vunpack.c.l.b16 %v1760
        %v1813 = vunpack.c.l.b16 %v1761
        %v1814 = vunpack.c.l.b16 %v1762
        %v1815 = vunpack.c.l.b16 %v1763
        %v1816 = vunpack.c.l.b16 %v1764
        %v1817 = vunpack.c.l.b16 %v1765
        %v1818 = vunpack.c.l.b16 %v1766
        %v1819 = vunpack.c.l.b16 %v1767
        %v1820 = vunpack.c.l.b16 %v1768
        %v1821 = vunpack.c.l.b16 %v1769
        %v1822 = vunpack.c.l.b16 %v1770
        %v1823 = vunpack.c.l.b16 %v1771
        %v1824 = vunpack.c.l.b16 %v1772
        %v1825 = vunpack.c.l.b16 %v1773
        %v1826 = vunpack.c.l.b16 %v1774
        %v1827 = vunpack.c.l.b16 %v1775
        %v1828 = vunpack.c.l.b16 %v1776
        %v1829 = vunpack.c.l.b16 %v1777
        %v1830 = vpack.c.b16 %v1807, %v1806
        %v1831 = vpack.c.b16 %v1809, %v1808
        %v1832 = vpack.c.b16 %v1811, %v1810
        %v1833 = vpack.c.b16 %v1813, %v1812
        %v1834 = vpack.c.b16 %v1815, %v1814
        %v1835 = vpack.c.b16 %v1817, %v1816
        %v1836 = vpack.c.b16 %v1819, %v1818
        %v1837 = vpack.c.b16 %v1821, %v1820
        %v1838 = vpack.c.b16 %v1823, %v1822
        %v1839 = vpack.c.b16 %v1825, %v1824
        %v1840 = vpack.c.b16 %v1827, %v1826
        %v1841 = vpack.c.b16 %v1829, %v1828
        %v1855 = vsel %vm1271, %v1753, 0
        %1857 = vmatpush.bf16.msra.mxu0 %v1837
        %1858 = vmatpush.bf16.msra.mxu0 %v1836
        %1859 = vmatpush.bf16.msra.mxu0 %v1835
        %1860 = vmatpush.bf16.msra.mxu0 %v1834
        %1861 = vmatpush.bf16.msra.mxu0 %v1833
        %1862 = vmatpush.bf16.msra.mxu0 %v1832
        %1863 = vmatpush.bf16.msra.mxu0 %v1831
        %1864 = vmatpush.bf16.msra.mxu0 %v1830
        %1865 = vmatmul.bf16.gmra.mxu0 %v1752
        %v1866 = vpop.f32.mrf.mxu0
        %v1867 = vadd.f32 %v1780, %v1866
        %v1868 = vpop.f32.mrf.mxu0
        %v1869 = vadd.f32 %v1780, %v1868
        %1870 = vdwg.mxu0
        %1871 = vmatpush.bf16.msra.mxu0 0
        %1872 = vmatpush.bf16.msra.mxu0 0
        %1873 = vmatpush.bf16.msra.mxu0 0
        %1874 = vmatpush.bf16.msra.mxu0 0
        %1875 = vmatpush.bf16.msra.mxu0 %v1841
        %1876 = vmatpush.bf16.msra.mxu0 %v1840
        %1877 = vmatpush.bf16.msra.mxu0 %v1839
        %1878 = vmatpush.bf16.msra.mxu0 %v1838
        %1879 = vmatmul.bf16.gmra.mxu0 %v1855
        %v1880 = vpop.f32.mrf.mxu0
        %v1881 = vadd.f32 %v1867, %v1880
        %v1882 = vpop.f32.mrf.mxu0
        %v1883 = vadd.f32 %v1869, %v1882
        %1884 = vdwg.mxu0
        %v1885 = vmax.f32 %v1881, 0.0
        %v1886 = vmax.f32 %v1883, 0.0
        %v1889 = vrot.slane %v1885, 2
        %v1890 = vrot.slane %v1885, 4
        %v1891 = vrot.slane %v1885, 6
        %v1892 = vrot.slane %v1886, 2
        %v1893 = vrot.slane %v1886, 4
        %v1894 = vrot.slane %v1886, 6
        %v1901 = vrot.slane %v1885, 7
        %v1902 = vrot.slane %v1901, 2
        %v1903 = vrot.slane %v1889, 7
        %v1904 = vrot.slane %v1903, 2
        %v1905 = vrot.slane %v1890, 7
        %v1906 = vrot.slane %v1905, 2
        %v1907 = vrot.slane %v1891, 7
        %v1908 = vrot.slane %v1907, 2
        %v1909 = vrot.slane %v1886, 7
        %v1910 = vrot.slane %v1909, 2
        %v1911 = vrot.slane %v1892, 7
        %v1912 = vrot.slane %v1911, 2
        %v1913 = vrot.slane %v1893, 7
        %v1914 = vrot.slane %v1913, 2
        %v1915 = vrot.slane %v1894, 7
        %v1916 = vrot.slane %v1915, 2
        %v1925 = vmax.f32 %v1885, %v1902
        %v1926 = vmax.f32 %v1889, %v1904
        %v1927 = vmax.f32 %v1890, %v1906
        %v1928 = vmax.f32 %v1891, %v1908
        %v1929 = vmax.f32 %v1886, %v1910
        %v1930 = vmax.f32 %v1892, %v1912
        %v1931 = vmax.f32 %v1893, %v1914
        %v1932 = vmax.f32 %v1894, %v1916
        %1941 = vrot.lane.b32.xlu0 %v1925, 64
        %v1942 = vpop.permute.xlu0 %1941
        %1943 = vrot.lane.b32.xlu0 %v1926, 64
        %v1944 = vpop.permute.xlu0 %1943
        %1945 = vrot.lane.b32.xlu0 %v1927, 64
        %v1946 = vpop.permute.xlu0 %1945
        %1947 = vrot.lane.b32.xlu0 %v1928, 64
        %v1948 = vpop.permute.xlu0 %1947
        %1949 = vrot.lane.b32.xlu0 %v1929, 64
        %v1950 = vpop.permute.xlu0 %1949
        %1951 = vrot.lane.b32.xlu0 %v1930, 64
        %v1952 = vpop.permute.xlu0 %1951
        %1953 = vrot.lane.b32.xlu0 %v1931, 64
        %v1954 = vpop.permute.xlu0 %1953
        %1955 = vrot.lane.b32.xlu0 %v1932, 64
        %v1956 = vpop.permute.xlu0 %1955
        %v1965 = vmax.f32 %v1925, %v1942
        %v1966 = vmax.f32 %v1926, %v1944
        %v1967 = vmax.f32 %v1927, %v1946
        %v1968 = vmax.f32 %v1928, %v1948
        %v1969 = vmax.f32 %v1929, %v1950
        %v1970 = vmax.f32 %v1930, %v1952
        %v1971 = vmax.f32 %v1931, %v1954
        %v1972 = vmax.f32 %v1932, %v1956
        %1973 = vst.msk [vmem:[#allocation5] sm:$0x1] %vm1311, %v1965
        %v1975 = vperm.slane %v1966, 0
        %1976 = vrot.lane.b32.xlu0 %v1975, 64
        %v1977 = vpop.permute.xlu0 %1976
        %vm1979 = vcmask 1040896
        %1980 = vst.msk [vmem:[#allocation5] sm:$0x1] %vm1979, %v1977
        %1981 = vst.msk [vmem:[#allocation5 + $0x1] sm:$0x1] %vm1311, %v1967
        %v1983 = vperm.slane %v1968, 0
        %1984 = vrot.lane.b32.xlu0 %v1983, 64
        %v1985 = vpop.permute.xlu0 %1984
        %1987 = vst.msk [vmem:[#allocation5 + $0x1] sm:$0x1] %vm1979, %v1985
        %1988 = vst.msk [vmem:[#allocation5 + $0x2] sm:$0x1] %vm1311, %v1969
        %v1990 = vperm.slane %v1970, 0
        %1991 = vrot.lane.b32.xlu0 %v1990, 64
        %v1992 = vpop.permute.xlu0 %1991
        %1994 = vst.msk [vmem:[#allocation5 + $0x2] sm:$0x1] %vm1979, %v1992
        %1995 = vst.msk [vmem:[#allocation5 + $0x3] sm:$0x1] %vm1311, %v1971
        %v1997 = vperm.slane %v1972, 0
        %1998 = vrot.lane.b32.xlu0 %v1997, 64
        %v1999 = vpop.permute.xlu0 %1998
        %2001 = vst.msk [vmem:[#allocation5 + $0x3] sm:$0x1] %vm1979, %v1999
        %v2002 = vld [vmem:[#allocation5] sm:$0xf]
        %v2003 = vpack.c.bf16 %v2002, %v2002
        %v2004 = vld [vmem:[%s7] sm:$0xf]
        %v2005 = vld [vmem:[%s7 + $0x4] sm:$0xf]
        %v2006 = vld [vmem:[%s7 + $0x8] sm:$0xf]
        %v2007 = vld [vmem:[%s7 + $0xc] sm:$0xf]
        %v2008 = vld [vmem:[%s7 + $0x10] sm:$0xf]
        %v2009 = vld [vmem:[%s7 + $0x14] sm:$0xf]
        %v2010 = vld [vmem:[%s7 + $0x18] sm:$0xf]
        %v2011 = vld [vmem:[%s7 + $0x1c] sm:$0xf]
        %v2012 = vld [vmem:[%s7 + $0x20] sm:$0xf]
        %v2013 = vld [vmem:[%s7 + $0x24] sm:$0xf]
        %v2014 = vld [vmem:[%s7 + $0x28] sm:$0xf]
        %v2015 = vld [vmem:[%s7 + $0x2c] sm:$0xf]
        %v2016 = vld [vmem:[%s7 + $0x30] sm:$0xf]
        %v2017 = vld [vmem:[%s7 + $0x34] sm:$0xf]
        %v2018 = vld [vmem:[%s7 + $0x38] sm:$0xf]
        %v2019 = vld [vmem:[%s7 + $0x3c] sm:$0xf]
        %v2020 = vld [vmem:[%s8] sm:$0x1]
        %v2022 = vperm.slane %v2020, 0
        %v2040 = vunpack.c.l.b16 %v2004
        %v2041 = vunpack.c.l.b16 %v2005
        %v2042 = vunpack.c.l.b16 %v2006
        %v2043 = vunpack.c.l.b16 %v2007
        %v2044 = vunpack.c.l.b16 %v2008
        %v2045 = vunpack.c.l.b16 %v2009
        %v2046 = vunpack.c.l.b16 %v2010
        %v2047 = vunpack.c.l.b16 %v2011
        %v2048 = vunpack.c.l.b16 %v2012
        %v2049 = vunpack.c.l.b16 %v2013
        %v2050 = vunpack.c.l.b16 %v2014
        %v2051 = vunpack.c.l.b16 %v2015
        %v2052 = vunpack.c.l.b16 %v2016
        %v2053 = vunpack.c.l.b16 %v2017
        %v2054 = vunpack.c.l.b16 %v2018
        %v2055 = vunpack.c.l.b16 %v2019
        %v2056 = vpack.c.b16 %v2041, %v2040
        %v2057 = vpack.c.b16 %v2043, %v2042
        %v2058 = vpack.c.b16 %v2045, %v2044
        %v2059 = vpack.c.b16 %v2047, %v2046
        %v2060 = vpack.c.b16 %v2049, %v2048
        %v2061 = vpack.c.b16 %v2051, %v2050
        %v2062 = vpack.c.b16 %v2053, %v2052
        %v2063 = vpack.c.b16 %v2055, %v2054
        %2072 = vmatpush.bf16.msra.mxu0 %v2063
        %2073 = vmatpush.bf16.msra.mxu0 %v2062
        %2074 = vmatpush.bf16.msra.mxu0 %v2061
        %2075 = vmatpush.bf16.msra.mxu0 %v2060
        %2076 = vmatpush.bf16.msra.mxu0 %v2059
        %2077 = vmatpush.bf16.msra.mxu0 %v2058
        %2078 = vmatpush.bf16.msra.mxu0 %v2057
        %2079 = vmatpush.bf16.msra.mxu0 %v2056
        %2080 = vmatmul.bf16.gmra.mxu0 %v2003
        %v2081 = vpop.f32.mrf.mxu0
        %v2082 = vadd.f32 %v2022, %v2081
        %v2083 = vpop.f32.mrf.mxu0
        %2084 = vdwg.mxu0
        %v2085 = vmax.f32 %v2082, 0.0
        %v2086 = vpack.c.bf16 %v2085, %v2085
        %v2087 = vld [vmem:[%s9] sm:$0xf]
        %v2088 = vld [vmem:[%s9 + $0x4] sm:$0xf]
        %v2089 = vld [vmem:[%s9 + $0x8] sm:$0xf]
        %v2090 = vld [vmem:[%s9 + $0xc] sm:$0xf]
        %v2091 = vld [vmem:[%s9 + $0x10] sm:$0xf]
        %v2092 = vld [vmem:[%s9 + $0x14] sm:$0xf]
        %v2093 = vld [vmem:[%s9 + $0x18] sm:$0xf]
        %v2094 = vld [vmem:[%s9 + $0x1c] sm:$0xf]
        %v2095 = vld [vmem:[%s10] sm:$0x1]
        %v2097 = vperm.slane %v2095, 0
        %v2107 = vunpack.c.l.b16 %v2087
        %v2108 = vunpack.c.l.b16 %v2088
        %v2109 = vunpack.c.l.b16 %v2089
        %v2110 = vunpack.c.l.b16 %v2090
        %v2111 = vunpack.c.l.b16 %v2091
        %v2112 = vunpack.c.l.b16 %v2092
        %v2113 = vunpack.c.l.b16 %v2093
        %v2114 = vunpack.c.l.b16 %v2094
        %v2115 = vpack.c.b16 %v2108, %v2107
        %v2116 = vpack.c.b16 %v2110, %v2109
        %v2117 = vpack.c.b16 %v2112, %v2111
        %v2118 = vpack.c.b16 %v2114, %v2113
        %v2124 = vsel %vm1271, %v2086, 0
        %2126 = vmatpush.bf16.msra.mxu0 0
        %2127 = vmatpush.bf16.msra.mxu0 0
        %2128 = vmatpush.bf16.msra.mxu0 0
        %2129 = vmatpush.bf16.msra.mxu0 0
        %2130 = vmatpush.bf16.msra.mxu0 %v2118
        %2131 = vmatpush.bf16.msra.mxu0 %v2117
        %2132 = vmatpush.bf16.msra.mxu0 %v2116
        %2133 = vmatpush.bf16.msra.mxu0 %v2115
        %2134 = vmatmul.bf16.gmra.mxu0 %v2124
        %v2135 = vpop.f32.mrf.mxu0
        %v2136 = vadd.f32 %v2097, %v2135
        %v2137 = vpop.f32.mrf.mxu0
        %2138 = vdwg.mxu0
        %v2139 = vmax.f32 %v2136, 0.0
        %v2140 = vpack.c.bf16 %v2139, %v2139
        %v2141 = vld [vmem:[%s11] sm:$0xf]
        %v2142 = vld [vmem:[%s11 + $0x4] sm:$0xf]
        %v2143 = vld [vmem:[%s11 + $0x8] sm:$0xf]
        %v2144 = vld [vmem:[%s11 + $0xc] sm:$0xf]
        %v2145 = vld [vmem:[%s11 + $0x10] sm:$0xf]
        %v2146 = vld [vmem:[%s11 + $0x14] sm:$0xf]
        %v2147 = vld [vmem:[%s11 + $0x18] sm:$0xf]
        %v2148 = vld [vmem:[%s11 + $0x1c] sm:$0xf]
        %v2149 = vld [vmem:[%s12] sm:$0x1]
        %v2151 = vperm.slane %v2149, 0
        %v2161 = vunpack.c.l.b16 %v2141
        %v2162 = vunpack.c.l.b16 %v2142
        %v2163 = vunpack.c.l.b16 %v2143
        %v2164 = vunpack.c.l.b16 %v2144
        %v2165 = vunpack.c.l.b16 %v2145
        %v2166 = vunpack.c.l.b16 %v2146
        %v2167 = vunpack.c.l.b16 %v2147
        %v2168 = vunpack.c.l.b16 %v2148
        %v2169 = vpack.c.b16 %v2162, %v2161
        %v2170 = vpack.c.b16 %v2164, %v2163
        %v2171 = vpack.c.b16 %v2166, %v2165
        %v2172 = vpack.c.b16 %v2168, %v2167
        %v2178 = vsel %vm1271, %v2140, 0
        %2180 = vmatpush.bf16.msra.mxu0 0
        %2181 = vmatpush.bf16.msra.mxu0 0
        %2182 = vmatpush.bf16.msra.mxu0 0
        %2183 = vmatpush.bf16.msra.mxu0 0
        %2184 = vmatpush.bf16.msra.mxu0 %v2172
        %2185 = vmatpush.bf16.msra.mxu0 %v2171
        %2186 = vmatpush.bf16.msra.mxu0 %v2170
        %2187 = vmatpush.bf16.msra.mxu0 %v2169
        %2188 = vmatmul.bf16.gmra.mxu0 %v2178
        %v2189 = vpop.f32.mrf.mxu0
        %v2190 = vadd.f32 %v2151, %v2189
        %v2191 = vpop.f32.mrf.mxu0
        %2192 = vdwg.mxu0
        %2193 = vst [vmem:[%s434] sm:$0xf] %v2190
        %s2194 = sand.u32 %s313, 1
        %s2195 = scalar_lea.sflag [#allocation7], %s2194
        %s2196 = sand.u32 %s313, 1
        %s2197 = smul.addr %s2196, 4
        %s2198 = scalar_lea.vmem [#allocation6], %s2197
        // Predicated region
        $region73: #{forward.1} parent=71 // pred_check
          %p2199 = pneg %p323
        $region74: #{forward.1} parent=71 // pred_check_branch
          %2201 = sbr.rel (%p2199) target = $region76
        $region75: #{forward.1} parent=71 // pred_region
          %2203 = vsyncadd %s2195, 0
          %s2204 = smul.addr %s27, 4
          %s2205 = scalar_lea.hbm %s13, %s2204
          %s2207 = sshll.u32 %s2198, 4
          %s2208 = int_to_ptr.vmem [resolvable:$true] %s2207
          %s2209 = sshll.u32 %s2205, 4
          %s2210 = int_to_ptr.hbm [resolvable:$true] %s2209
          %2212 = dma.vmem_to_hbm [thread:$0]  %s2208, 64, %s2210, %s2195
        $region76: #{forward.1} parent=71 // pred_fallthru
          _
      $region72: #{forward.1} parent=5 // pred_fallthru
        _
      %p2213 = scmp.le.s32.totalorder 2, %s22
      // Predicated region
      $region77: #{forward.1} parent=5 // pred_check
        %p2214 = pneg %p2213
      $region78: #{forward.1} parent=5 // pred_check_branch
        %2216 = sbr.rel (%p2214) target = $region80
      $region79: #{forward.1} parent=5 // pred_region
        %s2217 = ssub.s32 %s22, 2
        // Predicated region
        $region81: #{forward.1} parent=79 // pred_check
          %p2218 = pneg %p329
        $region82: #{forward.1} parent=79 // pred_check_branch
          %2220 = sbr.rel (%p2218) target = $region84
        $region83: #{forward.1} parent=79 // pred_region
          %s2221 = sand.u32 %s314, 1
          %s2222 = scalar_lea.sflag [#allocation7], %s2221
          %s2223 = sand.u32 %s314, 1
          %s2224 = smul.addr %s2223, 4
          %s2225 = scalar_lea.vmem [#allocation6], %s2224
          %2227 = dma.done %s2222, 64
        $region84: #{forward.1} parent=79 // pred_fallthru
          _
      $region80: #{forward.1} parent=5 // pred_fallthru
        _
    $region6: #{forward.1} parent=1 // loop_footer
      %s26 = sadd.s32 1, %s22
    $region7: #{forward.1} parent=1 // loop_footer_branch
      %21 = sbr.rel target = $region3
    $region8: #{forward.1} parent=1 // loop_exit
      _
    %2228 = vsyncpa [#allocation7], 1
    %s2229 = scalar_lea.sflag [#allocation7], 1
    %2230 = vsyncpa %s2229, 1

</llo_original>
